<compile_context>
chip_gen: v5e
topology: v5e:2x2
jax: 0.10.0
libtpu: 0.0.40
codegen_flags: <defaults>
</compile_context>

<pallas_src>
import math
from functools import partial

import jax
import jax.numpy as jnp
from jax import lax
from jax.experimental import pallas as pl
from jax.experimental.pallas import tpu as pltpu


# --------------------------------------------------------------------------
# Helpers
# --------------------------------------------------------------------------
def _layer_norm(y, g, b, eps=1e-5):
    mu = jnp.mean(y, axis=-1, keepdims=True)
    var = jnp.mean(jnp.square(y - mu), axis=-1, keepdims=True)
    return (y - mu) * lax.rsqrt(var + eps) * g + b


def _pad_vocab(v):
    """Pad vocab to a multiple of 128 (small) or 1024 (large) so decoder
    vocab tiles are always lane-dense and always divide the padded vocab."""
    if v <= 1024:
        return ((v + 127) // 128) * 128
    return ((v + 1023) // 1024) * 1024


def _tile(dim, pref, align):
    """Largest tile <= pref that divides `dim` and is a multiple of `align`
    (falls back to the full dim)."""
    if dim <= pref:
        return dim
    t = (pref // align) * align
    while t >= align:
        if dim % t == 0:
            return t
        t -= align
    return dim


def _pick_batch_tile(n, s, target_rows=512):
    """Batch elements per encoder tile: divides n, rows multiple of 8
    (unless it is the full batch), rows bounded by ~target_rows."""
    best = n
    for nb in range(1, n + 1):
        if n % nb:
            continue
        if (nb * s) % 8 and nb != n:
            continue
        if nb * s <= max(target_rows, s):
            best = nb
    return best


# --------------------------------------------------------------------------
# Fused encoder-stack kernel: grid = (batch_tiles, nlayers).
# The output block (constant index across the layer axis) is the resident
# activation; the embedded input lives in HBM (pl.ANY) and is DMA'd in once.
# --------------------------------------------------------------------------
def encoder_stack_kernel(x_hbm,
                         wqkv_ref, bqkv_ref, wo_ref, bo_ref,
                         w1_ref, b1_ref, w2_ref, b2_ref,
                         g1_ref, beta1_ref, g2_ref, beta2_ref,
                         o_ref, dma_sem, *, nhead, nbatch, seq, has_mask):
    i = pl.program_id(0)          # batch tile
    l = pl.program_id(1)          # layer
    rows = nbatch * seq

    # Load the embedded input into the resident activation once per batch
    # tile; writeback to HBM only happens after the last layer.
    @pl.when(l == 0)
    def _():
        cp = pltpu.make_async_copy(
            x_hbm.at[pl.ds(i * rows, rows), :], o_ref, dma_sem)
        cp.start()
        cp.wait()

    x = o_ref[...]                                   # (rows, E) f32
    E = x.shape[-1]
    dh = E // nhead
    inv_sqrt_dh = 1.0 / math.sqrt(dh)

    # Fused QKV projection: one (rows,E)x(E,3E) bf16 MXU matmul, f32 accum.
    qkv = jnp.dot(x.astype(jnp.bfloat16), wqkv_ref[0],
                  preferred_element_type=jnp.float32) + bqkv_ref[0]
    q = qkv[:, :E].reshape(nbatch, seq, E).astype(jnp.bfloat16)
    k = qkv[:, E:2 * E].reshape(nbatch, seq, E).astype(jnp.bfloat16)
    v = qkv[:, 2 * E:].reshape(nbatch, seq, E).astype(jnp.bfloat16)

    # Causal additive mask, (seq, seq) only — applied via implicit broadcast.
    if has_mask:
        row_id = lax.broadcasted_iota(jnp.int32, (seq, seq), 0)
        col_id = lax.broadcasted_iota(jnp.int32, (seq, seq), 1)
        mask = jnp.where(col_id <= row_id, 0.0, -1e30).astype(jnp.float32)

    # Per-head attention with 3-D (single leading batch dim) einsums;
    # heads are assembled once and fed to a single K=E output projection.
    ctx_heads = []
    for h in range(nhead):
        sl = slice(h * dh, (h + 1) * dh)
        qh, kh, vh = q[:, :, sl], k[:, :, sl], v[:, :, sl]
        s = jnp.einsum('bqd,bkd->bqk', qh, kh,
                       preferred_element_type=jnp.float32) * inv_sqrt_dh
        if has_mask:
            s = s + mask[None]
        m = jnp.max(s, axis=-1, keepdims=True)
        p = jnp.exp(s - m)
        p = p * pl.reciprocal(jnp.sum(p, axis=-1, keepdims=True), approx=True)
        ctx_heads.append(jnp.einsum('bqk,bkd->bqd', p.astype(jnp.bfloat16), vh,
                                    preferred_element_type=jnp.float32))

    ctx = jnp.concatenate(ctx_heads, axis=-1).reshape(rows, E)
    attn = jnp.dot(ctx.astype(jnp.bfloat16), wo_ref[0],
                   preferred_element_type=jnp.float32) + bo_ref[0]

    # Residual + LayerNorm 1 (post-norm), f32 statistics.
    y = _layer_norm(x + attn, g1_ref[0], beta1_ref[0])

    # Feed-forward: linear -> relu -> linear (bf16 matmuls, f32 accumulate).
    h1 = jnp.dot(y.astype(jnp.bfloat16), w1_ref[0],
                 preferred_element_type=jnp.float32) + b1_ref[0]
    h1 = jnp.maximum(h1, 0.0)
    ff = jnp.dot(h1.astype(jnp.bfloat16), w2_ref[0],
                 preferred_element_type=jnp.float32) + b2_ref[0]

    # Residual + LayerNorm 2, stored in place in the resident output block.
    o_ref[...] = _layer_norm(y + ff, g2_ref[0], beta2_ref[0])


# --------------------------------------------------------------------------
# Decoder: linear + log_softmax, one kernel, two-phase vocab sweep.
#   phase 0 (j <  nv): online logsumexp over vocab tiles (no HBM write)
#   phase 1 (j >= nv): recompute the logits tile, write logits - lse directly
# Output is written straight into (S, N*Vp) layout (no final transpose).
# --------------------------------------------------------------------------
def decoder_logsoftmax_kernel(x_ref, wd_ref, bd_ref, out_ref, m_sc, s_sc, *, nv):
    j = pl.program_id(2)

    @pl.when(j == 0)
    def _():
        m_sc[...] = jnp.full_like(m_sc, -1e30)
        s_sc[...] = jnp.zeros_like(s_sc)

    logits = jnp.dot(x_ref[...], wd_ref[...],
                     preferred_element_type=jnp.float32) + bd_ref[...]

    @pl.when(j < nv)
    def _():
        m_prev = m_sc[...]
        m_new = jnp.maximum(m_prev, jnp.max(logits, axis=-1, keepdims=True))
        s_sc[...] = (s_sc[...] * jnp.exp(m_prev - m_new)
                     + jnp.sum(jnp.exp(logits - m_new), axis=-1, keepdims=True))
        m_sc[...] = m_new

    @pl.when(j >= nv)
    def _():
        out_ref[...] = logits - (m_sc[...] + jnp.log(s_sc[...]))


# --------------------------------------------------------------------------
# Parameter construction (deterministic, synthetic — mirrors module __init__)
# --------------------------------------------------------------------------
def init_params(key, ntoken, ninp, nhead, nhid, nlayers, max_len=5000):
    keys = jax.random.split(key, 2 + nlayers)
    initrange = 0.1

    # nn.Embedding(ntoken, ninp): uniform(-0.1, 0.1)
    emb = jax.random.uniform(keys[0], (ntoken, ninp), jnp.float32,
                             -initrange, initrange)

    # nn.Linear(ninp, ntoken): weight uniform(-0.1, 0.1), bias zeros.
    # Stored pre-transposed (in, out) and padded on the vocab axis; padded
    # bias = -1e30 so padded logits never affect the log-softmax.
    vpad = _pad_vocab(ntoken)
    wd = jax.random.uniform(keys[1], (ninp, ntoken), jnp.float32,
                            -initrange, initrange)
    wd = jnp.pad(wd, ((0, 0), (0, vpad - ntoken)))
    bd = jnp.concatenate(
        [jnp.zeros((1, ntoken), jnp.float32),
         jnp.full((1, vpad - ntoken), -1e30, jnp.float32)], axis=1)

    # Sinusoidal positional encoding (same formula as PositionalEncoding).
    position = jnp.arange(max_len, dtype=jnp.float32)[:, None]
    div_term = jnp.exp(jnp.arange(0, ninp, 2, dtype=jnp.float32)
                       * (-math.log(10000.0) / ninp))
    pe = jnp.zeros((max_len, ninp), jnp.float32)
    pe = pe.at[:, 0::2].set(jnp.sin(position * div_term))
    pe = pe.at[:, 1::2].set(jnp.cos(position * div_term))

    def u(kk, shape, fan_in):
        bound = 1.0 / math.sqrt(fan_in)
        return jax.random.uniform(kk, shape, jnp.float32, -bound, bound)

    wqkv, bqkv, wo, bo = [], [], [], []
    w1, b1, w2, b2 = [], [], [], []
    g1, beta1, g2, beta2 = [], [], [], []
    for l in range(nlayers):
        lk = jax.random.split(keys[2 + l], 8)
        wqkv.append(jnp.concatenate([u(lk[0], (ninp, ninp), ninp),
                                     u(lk[1], (ninp, ninp), ninp),
                                     u(lk[2], (ninp, ninp), ninp)], axis=1))
        bqkv.append(jnp.zeros((1, 3 * ninp), jnp.float32))
        wo.append(u(lk[3], (ninp, ninp), ninp))
        bo.append(jnp.zeros((1, ninp), jnp.float32))
        w1.append(u(lk[4], (ninp, nhid), ninp))
        b1.append(u(lk[5], (1, nhid), ninp))
        w2.append(u(lk[6], (nhid, ninp), nhid))
        b2.append(u(lk[7], (1, ninp), nhid))
        g1.append(jnp.ones((1, ninp), jnp.float32))
        beta1.append(jnp.zeros((1, ninp), jnp.float32))
        g2.append(jnp.ones((1, ninp), jnp.float32))
        beta2.append(jnp.zeros((1, ninp), jnp.float32))

    stack = lambda xs: jnp.stack(xs, axis=0)
    return dict(
        emb=emb, pe=pe,
        # Matmul weights in bf16 (MXU); biases and LayerNorm params stay f32.
        wd=wd.astype(jnp.bfloat16), bd=bd,
        wqkv=stack(wqkv).astype(jnp.bfloat16), bqkv=stack(bqkv),
        wo=stack(wo).astype(jnp.bfloat16), bo=stack(bo),
        w1=stack(w1).astype(jnp.bfloat16), b1=stack(b1),
        w2=stack(w2).astype(jnp.bfloat16), b2=stack(b2),
        g1=stack(g1), beta1=stack(beta1), g2=stack(g2), beta2=stack(beta2),
    )


# --------------------------------------------------------------------------
# Forward pass wrapper
# --------------------------------------------------------------------------
def transformer_forward(tokens, params, *, nhead, has_mask=True):
    S, N = tokens.shape
    emb = params["emb"]
    V, E = emb.shape
    R = N * S

    # ---- embedding gather * sqrt(ninp) + positional encoding (plain JAX) ----
    x = jnp.take(emb, tokens.T, axis=0) * math.sqrt(E)          # (N, S, E)
    x = (x + params["pe"][:S][None]).reshape(R, E).astype(jnp.float32)

    # ---- fused transformer encoder stack (single pallas_call) ----
    nlayers = params["wqkv"].shape[0]
    nhid = params["w1"].shape[-1]
    NB = _pick_batch_tile(N, S)
    num_bt = N // NB
    rows_tile = NB * S

    weight_args = (params["wqkv"], params["bqkv"], params["wo"], params["bo"],
                   params["w1"], params["b1"], params["w2"], params["b2"],
                   params["g1"], params["beta1"], params["g2"], params["beta2"])

    enc_est = (2 * 2 * (3 * E * E + E * E + 2 * E * nhid)     # bf16 weights x2 buffers
               + 2 * 4 * rows_tile * E                        # resident output block
               + 4 * rows_tile * (3 * E + 2 * E + nhid)       # qkv / ctx / ffn interm.
               + 4 * NB * nhead * S * S * 2)                  # scores / probs
    enc_vmem = int(min(max(2 * enc_est, 16 << 20), 64 << 20))

    x = pl.pallas_call(
        partial(encoder_stack_kernel, nhead=nhead, nbatch=NB, seq=S,
                has_mask=has_mask),
        out_shape=jax.ShapeDtypeStruct((R, E), jnp.float32),
        grid=(num_bt, nlayers),
        in_specs=[pl.BlockSpec(memory_space=pl.ANY)]          # x stays in HBM
                 + [pl.BlockSpec((1,) + a.shape[1:], lambda i, l: (l, 0, 0))
                    for a in weight_args],
        out_specs=pl.BlockSpec((rows_tile, E), lambda i, l: (i, 0)),
        scratch_shapes=[pltpu.SemaphoreType.DMA(())],
        compiler_params=pltpu.CompilerParams(
            dimension_semantics=("parallel", "arbitrary"),
            vmem_limit_bytes=enc_vmem),
    )(x, *weight_args)

    # ---- decoder: linear + log_softmax, output directly in (S, N, V) ----
    wd, bd = params["wd"], params["bd"]               # (E, Vp) bf16, (1, Vp) f32
    Vp = wd.shape[1]
    TS = _tile(S, 512, 8)                             # rows per tile (divides S)
    TV = min(Vp, 1024)                                # vocab tile (multiple of 128)
    nv = Vp // TV
    nst = S // TS

    x_dec = x.astype(jnp.bfloat16)                    # bf16 activations for MXU

    dec_est = (2 * TS * E * 2 + 2 * E * TV * 2 + 2 * TV * 4
               + 2 * TS * TV * 4 + 3 * TS * TV * 4 + 64 * TS)
    dec_vmem = int(min(max(2 * dec_est, 16 << 20), 64 << 20))

    out = pl.pallas_call(
        partial(decoder_logsoftmax_kernel, nv=nv),
        out_shape=jax.ShapeDtypeStruct((S, N * Vp), jnp.float32),
        grid=(N, nst, 2 * nv),
        in_specs=[pl.BlockSpec((TS, E), lambda n, st, j: (n * nst + st, 0)),
                  pl.BlockSpec((E, TV),
                               lambda n, st, j: (0, jnp.where(j < nv, j, j - nv))),
                  pl.BlockSpec((1, TV),
                               lambda n, st, j: (0, jnp.where(j < nv, j, j - nv)))],
        out_specs=pl.BlockSpec(
            (TS, TV), lambda n, st, j: (st, n * nv + jnp.maximum(j - nv, 0))),
        scratch_shapes=[pltpu.VMEM((TS, 1), jnp.float32),
                        pltpu.VMEM((TS, 1), jnp.float32)],
        compiler_params=pltpu.CompilerParams(
            dimension_semantics=("parallel", "parallel", "arbitrary"),
            vmem_limit_bytes=dec_vmem),
    )(x_dec, wd, bd)

    # (S, N*Vp) -> (S, N, Vp) is a free reshape; drop vocab padding if any.
    out = out.reshape(S, N, Vp)
    if Vp != V:
        out = out[:, :, :V]
    return out


# --------------------------------------------------------------------------
if __name__ == "__main__":
    # Small shapes consistent with the module's forward:
    #   tokens: (seq=8, batch=2) int32 in [0, ntoken)
    ntoken, ninp, nhead, nhid, nlayers = 100, 32, 2, 64, 2
    S, N = 8, 2

    key = jax.random.PRNGKey(0)
    pkey, tkey = jax.random.split(key)
    params = init_params(pkey, ntoken, ninp, nhead, nhid, nlayers)
    tokens = jax.random.randint(tkey, (S, N), 0, ntoken, dtype=jnp.int32)

    fwd = jax.jit(partial(transformer_forward, nhead=nhead, has_mask=True))
    out = jax.block_until_ready(fwd(tokens, params))

    assert out.shape == (S, N, ntoken), out.shape
    assert bool(jnp.all(jnp.isfinite(out)))
    # log_softmax rows should sum to ~1 in prob space
    assert bool(jnp.allclose(jnp.sum(jnp.exp(out), axis=-1), 1.0, atol=1e-3))
    print("KERNEL_OK")
</pallas_src>

<mosaic_0001>
module attributes {stable_mosaic.version = 11 : i64} {
  func.func @encoder_stack_kernel(%arg0: i32, %arg1: i32, %arg2: memref<16x32xf32, #tpu.memory_space<any>>, %arg3: memref<1x32x96xbf16, #tpu.memory_space<vmem>>, %arg4: memref<1x1x96xf32, #tpu.memory_space<vmem>>, %arg5: memref<1x32x32xbf16, #tpu.memory_space<vmem>>, %arg6: memref<1x1x32xf32, #tpu.memory_space<vmem>>, %arg7: memref<1x32x64xbf16, #tpu.memory_space<vmem>>, %arg8: memref<1x1x64xf32, #tpu.memory_space<vmem>>, %arg9: memref<1x64x32xbf16, #tpu.memory_space<vmem>>, %arg10: memref<1x1x32xf32, #tpu.memory_space<vmem>>, %arg11: memref<1x1x32xf32, #tpu.memory_space<vmem>>, %arg12: memref<1x1x32xf32, #tpu.memory_space<vmem>>, %arg13: memref<1x1x32xf32, #tpu.memory_space<vmem>>, %arg14: memref<1x1x32xf32, #tpu.memory_space<vmem>>, %arg15: memref<16x32xf32, #tpu.memory_space<vmem>>, %arg16: memref<!tpu.dma_semaphore, #tpu.memory_space<semaphore_mem>>) attributes {dimension_semantics = [#tpu.dimension_semantics<parallel>, #tpu.dimension_semantics<arbitrary>], iteration_bounds = array<i64: 1, 2>, scalar_prefetch = 0 : i64, scratch_operands = 1 : i64, tpu.core_type = #tpu.core_type<tc>, window_params = [{}, {transform_indices = @transform_1, window_bounds = array<i64: 1, 32, 96>}, {transform_indices = @transform_2, window_bounds = array<i64: 1, 1, 96>}, {transform_indices = @transform_3, window_bounds = array<i64: 1, 32, 32>}, {transform_indices = @transform_4, window_bounds = array<i64: 1, 1, 32>}, {transform_indices = @transform_5, window_bounds = array<i64: 1, 32, 64>}, {transform_indices = @transform_6, window_bounds = array<i64: 1, 1, 64>}, {transform_indices = @transform_7, window_bounds = array<i64: 1, 64, 32>}, {transform_indices = @transform_8, window_bounds = array<i64: 1, 1, 32>}, {transform_indices = @transform_9, window_bounds = array<i64: 1, 1, 32>}, {transform_indices = @transform_10, window_bounds = array<i64: 1, 1, 32>}, {transform_indices = @transform_11, window_bounds = array<i64: 1, 1, 32>}, {transform_indices = @transform_12, window_bounds = array<i64: 1, 1, 32>}, {transform_indices = @transform_13, window_bounds = array<i64: 16, 32>}]} {
    %c0_i32 = arith.constant 0 : i32
    %0 = arith.cmpi eq, %arg1, %c0_i32 : i32
    %1 = arith.extui %0 : i1 to i32
    %c0_i32_0 = arith.constant 0 : i32
    %2 = arith.cmpi ne, %1, %c0_i32_0 : i32
    scf.if %2 {
      %c16_i32 = arith.constant 16 : i32
      %152 = arith.muli %arg0, %c16_i32 : i32
      %c0_i32_66 = arith.constant 0 : i32
      %153 = tpu.memref_slice %arg2[%152, %c0_i32_66] : memref<16x32xf32, #tpu.memory_space<any>> -> memref<16x32xf32, #tpu.memory_space<any>>
      tpu.enqueue_dma source(%153 : memref<16x32xf32, #tpu.memory_space<any>>) target(%arg15 : memref<16x32xf32, #tpu.memory_space<vmem>>) target_semaphore(%arg16 : memref<!tpu.dma_semaphore, #tpu.memory_space<semaphore_mem>>)
      %c0_i32_67 = arith.constant 0 : i32
      %154 = tpu.memref_slice %arg2[%152, %c0_i32_67] : memref<16x32xf32, #tpu.memory_space<any>> -> memref<16x32xf32, #tpu.memory_space<any>>
      tpu.wait_dma2 semaphore(%arg16 : memref<!tpu.dma_semaphore, #tpu.memory_space<semaphore_mem>>) src(%154 : memref<16x32xf32, #tpu.memory_space<any>>) dst(%arg15 : memref<16x32xf32, #tpu.memory_space<vmem>>)
    } else {
    }
    %c0 = arith.constant 0 : index
    %c0_1 = arith.constant 0 : index
    %3 = vector.load %arg15[%c0, %c0_1] : memref<16x32xf32, #tpu.memory_space<vmem>>, vector<16x32xf32>
    %4 = arith.truncf %3 : vector<16x32xf32> to vector<16x32xbf16>
    %c0_2 = arith.constant 0 : index
    %c0_3 = arith.constant 0 : index
    %c0_4 = arith.constant 0 : index
    %5 = vector.load %arg3[%c0_2, %c0_3, %c0_4] : memref<1x32x96xbf16, #tpu.memory_space<vmem>>, vector<1x32x96xbf16>
    %6 = vector.shape_cast %5 : vector<1x32x96xbf16> to vector<32x96xbf16>
    %cst = arith.constant dense<0.000000e+00> : vector<16x96xf32>
    %7 = tpu.matmul %4, %6, %cst {dimension_numbers = #tpu.dot_dimension_numbers<[1], [0], [0], [1], [0, 0, 1, 1], [], []>} : vector<16x32xbf16>, vector<32x96xbf16>, vector<16x96xf32> -> vector<16x96xf32>
    %c0_5 = arith.constant 0 : index
    %c0_6 = arith.constant 0 : index
    %c0_7 = arith.constant 0 : index
    %8 = vector.load %arg4[%c0_5, %c0_6, %c0_7] : memref<1x1x96xf32, #tpu.memory_space<vmem>>, vector<1x1x96xf32>
    %9 = vector.shape_cast %8 : vector<1x1x96xf32> to vector<1x96xf32>
    %10 = vector.broadcast %9 : vector<1x96xf32> to vector<16x96xf32>
    %11 = arith.addf %7, %10 : vector<16x96xf32>
    %12 = vector.extract_strided_slice %11 {offsets = [0, 0], sizes = [16, 32], strides = [1, 1]} : vector<16x96xf32> to vector<16x32xf32>
    %13 = vector.shape_cast %12 : vector<16x32xf32> to vector<2x8x32xf32>
    %14 = arith.truncf %13 : vector<2x8x32xf32> to vector<2x8x32xbf16>
    %15 = vector.extract_strided_slice %11 {offsets = [0, 32], sizes = [16, 32], strides = [1, 1]} : vector<16x96xf32> to vector<16x32xf32>
    %16 = vector.shape_cast %15 : vector<16x32xf32> to vector<2x8x32xf32>
    %17 = arith.truncf %16 : vector<2x8x32xf32> to vector<2x8x32xbf16>
    %18 = vector.extract_strided_slice %11 {offsets = [0, 64], sizes = [16, 32], strides = [1, 1]} : vector<16x96xf32> to vector<16x32xf32>
    %19 = vector.shape_cast %18 : vector<16x32xf32> to vector<2x8x32xf32>
    %20 = arith.truncf %19 : vector<2x8x32xf32> to vector<2x8x32xbf16>
    %21 = tpu.iota {dimensions = array<i32: 0>} : vector<8x8xi32>
    %22 = tpu.iota {dimensions = array<i32: 1>} : vector<8x8xi32>
    %23 = arith.cmpi sle, %22, %21 : vector<8x8xi32>
    %cst_8 = arith.constant 0.000000e+00 : f32
    %cst_9 = arith.constant -1.000000e+30 : f32
    %24 = vector.broadcast %cst_8 : f32 to vector<8x8xf32>
    %25 = vector.broadcast %cst_9 : f32 to vector<8x8xf32>
    %26 = arith.select %23, %24, %25 : vector<8x8xi1>, vector<8x8xf32>
    %27 = vector.extract_strided_slice %14 {offsets = [0, 0, 0], sizes = [2, 8, 16], strides = [1, 1, 1]} : vector<2x8x32xbf16> to vector<2x8x16xbf16>
    %28 = vector.extract_strided_slice %17 {offsets = [0, 0, 0], sizes = [2, 8, 16], strides = [1, 1, 1]} : vector<2x8x32xbf16> to vector<2x8x16xbf16>
    %29 = vector.extract_strided_slice %20 {offsets = [0, 0, 0], sizes = [2, 8, 16], strides = [1, 1, 1]} : vector<2x8x32xbf16> to vector<2x8x16xbf16>
    "tpu.trace_start"() <{level = 10 : i32, message = "bqd,bkd->bqk"}> : () -> ()
    %cst_10 = arith.constant dense<0.000000e+00> : vector<2x8x8xf32>
    %30 = tpu.matmul %27, %28, %cst_10 {dimension_numbers = #tpu.dot_dimension_numbers<[2], [2], [1], [1], [0, 0, 0, 1, 1, 1], [0], [0]>} : vector<2x8x16xbf16>, vector<2x8x16xbf16>, vector<2x8x8xf32> -> vector<2x8x8xf32>
    "tpu.trace_stop"() : () -> ()
    %cst_11 = arith.constant 2.500000e-01 : f32
    %31 = vector.broadcast %cst_11 : f32 to vector<2x8x8xf32>
    %32 = arith.mulf %30, %31 : vector<2x8x8xf32>
    %33 = vector.shape_cast %26 : vector<8x8xf32> to vector<1x8x8xf32>
    %34 = vector.broadcast %33 : vector<1x8x8xf32> to vector<2x8x8xf32>
    %35 = arith.addf %32, %34 : vector<2x8x8xf32>
    %cst_12 = arith.constant dense<0xFF800000> : vector<2x8xf32>
    %36 = vector.multi_reduction <maximumf>, %35, %cst_12 [2] : vector<2x8x8xf32> to vector<2x8xf32>
    %37 = vector.shape_cast %36 : vector<2x8xf32> to vector<2x8x1xf32>
    %38 = vector.broadcast %37 : vector<2x8x1xf32> to vector<2x8x8xf32>
    %39 = arith.subf %35, %38 : vector<2x8x8xf32>
    %40 = math.exp %39 : vector<2x8x8xf32>
    %cst_13 = arith.constant dense<0.000000e+00> : vector<2x8xf32>
    %41 = vector.multi_reduction <add>, %40, %cst_13 [2] : vector<2x8x8xf32> to vector<2x8xf32>
    %42 = vector.shape_cast %41 : vector<2x8xf32> to vector<2x8x1xf32>
    %43 = tpu.reciprocal %42 {approx = true} : vector<2x8x1xf32> -> vector<2x8x1xf32>
    %44 = vector.broadcast %43 : vector<2x8x1xf32> to vector<2x8x8xf32>
    %45 = arith.mulf %40, %44 : vector<2x8x8xf32>
    %46 = arith.truncf %45 : vector<2x8x8xf32> to vector<2x8x8xbf16>
    "tpu.trace_start"() <{level = 10 : i32, message = "bqk,bkd->bqd"}> : () -> ()
    %cst_14 = arith.constant dense<0.000000e+00> : vector<2x8x16xf32>
    %47 = tpu.matmul %46, %29, %cst_14 {dimension_numbers = #tpu.dot_dimension_numbers<[2], [1], [1], [2], [0, 0, 0, 1, 1, 2], [0], [0]>} : vector<2x8x8xbf16>, vector<2x8x16xbf16>, vector<2x8x16xf32> -> vector<2x8x16xf32>
    "tpu.trace_stop"() : () -> ()
    %48 = vector.extract_strided_slice %14 {offsets = [0, 0, 16], sizes = [2, 8, 16], strides = [1, 1, 1]} : vector<2x8x32xbf16> to vector<2x8x16xbf16>
    %49 = vector.extract_strided_slice %17 {offsets = [0, 0, 16], sizes = [2, 8, 16], strides = [1, 1, 1]} : vector<2x8x32xbf16> to vector<2x8x16xbf16>
    %50 = vector.extract_strided_slice %20 {offsets = [0, 0, 16], sizes = [2, 8, 16], strides = [1, 1, 1]} : vector<2x8x32xbf16> to vector<2x8x16xbf16>
    "tpu.trace_start"() <{level = 10 : i32, message = "bqd,bkd->bqk"}> : () -> ()
    %cst_15 = arith.constant dense<0.000000e+00> : vector<2x8x8xf32>
    %51 = tpu.matmul %48, %49, %cst_15 {dimension_numbers = #tpu.dot_dimension_numbers<[2], [2], [1], [1], [0, 0, 0, 1, 1, 1], [0], [0]>} : vector<2x8x16xbf16>, vector<2x8x16xbf16>, vector<2x8x8xf32> -> vector<2x8x8xf32>
    "tpu.trace_stop"() : () -> ()
    %cst_16 = arith.constant 2.500000e-01 : f32
    %52 = vector.broadcast %cst_16 : f32 to vector<2x8x8xf32>
    %53 = arith.mulf %51, %52 : vector<2x8x8xf32>
    %54 = vector.shape_cast %26 : vector<8x8xf32> to vector<1x8x8xf32>
    %55 = vector.broadcast %54 : vector<1x8x8xf32> to vector<2x8x8xf32>
    %56 = arith.addf %53, %55 : vector<2x8x8xf32>
    %cst_17 = arith.constant dense<0xFF800000> : vector<2x8xf32>
    %57 = vector.multi_reduction <maximumf>, %56, %cst_17 [2] : vector<2x8x8xf32> to vector<2x8xf32>
    %58 = vector.shape_cast %57 : vector<2x8xf32> to vector<2x8x1xf32>
    %59 = vector.broadcast %58 : vector<2x8x1xf32> to vector<2x8x8xf32>
    %60 = arith.subf %56, %59 : vector<2x8x8xf32>
    %61 = math.exp %60 : vector<2x8x8xf32>
    %cst_18 = arith.constant dense<0.000000e+00> : vector<2x8xf32>
    %62 = vector.multi_reduction <add>, %61, %cst_18 [2] : vector<2x8x8xf32> to vector<2x8xf32>
    %63 = vector.shape_cast %62 : vector<2x8xf32> to vector<2x8x1xf32>
    %64 = tpu.reciprocal %63 {approx = true} : vector<2x8x1xf32> -> vector<2x8x1xf32>
    %65 = vector.broadcast %64 : vector<2x8x1xf32> to vector<2x8x8xf32>
    %66 = arith.mulf %61, %65 : vector<2x8x8xf32>
    %67 = arith.truncf %66 : vector<2x8x8xf32> to vector<2x8x8xbf16>
    "tpu.trace_start"() <{level = 10 : i32, message = "bqk,bkd->bqd"}> : () -> ()
    %cst_19 = arith.constant dense<0.000000e+00> : vector<2x8x16xf32>
    %68 = tpu.matmul %67, %50, %cst_19 {dimension_numbers = #tpu.dot_dimension_numbers<[2], [1], [1], [2], [0, 0, 0, 1, 1, 2], [0], [0]>} : vector<2x8x8xbf16>, vector<2x8x16xbf16>, vector<2x8x16xf32> -> vector<2x8x16xf32>
    "tpu.trace_stop"() : () -> ()
    %69 = tpu.concatenate %47, %68 in 2 : vector<2x8x16xf32>, vector<2x8x16xf32> -> vector<2x8x32xf32>
    %70 = vector.shape_cast %69 : vector<2x8x32xf32> to vector<16x32xf32>
    %71 = arith.truncf %70 : vector<16x32xf32> to vector<16x32xbf16>
    %c0_20 = arith.constant 0 : index
    %c0_21 = arith.constant 0 : index
    %c0_22 = arith.constant 0 : index
    %72 = vector.load %arg5[%c0_20, %c0_21, %c0_22] : memref<1x32x32xbf16, #tpu.memory_space<vmem>>, vector<1x32x32xbf16>
    %73 = vector.shape_cast %72 : vector<1x32x32xbf16> to vector<32x32xbf16>
    %cst_23 = arith.constant dense<0.000000e+00> : vector<16x32xf32>
    %74 = tpu.matmul %71, %73, %cst_23 {dimension_numbers = #tpu.dot_dimension_numbers<[1], [0], [0], [1], [0, 0, 1, 1], [], []>} : vector<16x32xbf16>, vector<32x32xbf16>, vector<16x32xf32> -> vector<16x32xf32>
    %c0_24 = arith.constant 0 : index
    %c0_25 = arith.constant 0 : index
    %c0_26 = arith.constant 0 : index
    %75 = vector.load %arg6[%c0_24, %c0_25, %c0_26] : memref<1x1x32xf32, #tpu.memory_space<vmem>>, vector<1x1x32xf32>
    %76 = vector.shape_cast %75 : vector<1x1x32xf32> to vector<1x32xf32>
    %77 = vector.broadcast %76 : vector<1x32xf32> to vector<16x32xf32>
    %78 = arith.addf %74, %77 : vector<16x32xf32>
    %79 = arith.addf %3, %78 : vector<16x32xf32>
    %c0_27 = arith.constant 0 : index
    %c0_28 = arith.constant 0 : index
    %c0_29 = arith.constant 0 : index
    %80 = vector.load %arg11[%c0_27, %c0_28, %c0_29] : memref<1x1x32xf32, #tpu.memory_space<vmem>>, vector<1x1x32xf32>
    %81 = vector.shape_cast %80 : vector<1x1x32xf32> to vector<1x32xf32>
    %c0_30 = arith.constant 0 : index
    %c0_31 = arith.constant 0 : index
    %c0_32 = arith.constant 0 : index
    %82 = vector.load %arg12[%c0_30, %c0_31, %c0_32] : memref<1x1x32xf32, #tpu.memory_space<vmem>>, vector<1x1x32xf32>
    %83 = vector.shape_cast %82 : vector<1x1x32xf32> to vector<1x32xf32>
    %cst_33 = arith.constant dense<0.000000e+00> : vector<16xf32>
    %84 = vector.multi_reduction <add>, %79, %cst_33 [1] : vector<16x32xf32> to vector<16xf32>
    %85 = vector.shape_cast %84 : vector<16xf32> to vector<16x1xf32>
    %cst_34 = arith.constant 3.200000e+01 : f32
    %86 = vector.broadcast %cst_34 : f32 to vector<16x1xf32>
    %87 = arith.divf %85, %86 : vector<16x1xf32>
    %88 = vector.broadcast %87 : vector<16x1xf32> to vector<16x32xf32>
    %89 = arith.subf %79, %88 : vector<16x32xf32>
    %90 = arith.mulf %89, %89 : vector<16x32xf32>
    %cst_35 = arith.constant dense<0.000000e+00> : vector<16xf32>
    %91 = vector.multi_reduction <add>, %90, %cst_35 [1] : vector<16x32xf32> to vector<16xf32>
    %92 = vector.shape_cast %91 : vector<16xf32> to vector<16x1xf32>
    %cst_36 = arith.constant 3.200000e+01 : f32
    %93 = vector.broadcast %cst_36 : f32 to vector<16x1xf32>
    %94 = arith.divf %92, %93 : vector<16x1xf32>
    %95 = vector.broadcast %87 : vector<16x1xf32> to vector<16x32xf32>
    %96 = arith.subf %79, %95 : vector<16x32xf32>
    %cst_37 = arith.constant 9.99999974E-6 : f32
    %97 = vector.broadcast %cst_37 : f32 to vector<16x1xf32>
    %98 = arith.addf %94, %97 : vector<16x1xf32>
    %99 = math.rsqrt %98 : vector<16x1xf32>
    %100 = vector.broadcast %99 : vector<16x1xf32> to vector<16x32xf32>
    %101 = arith.mulf %96, %100 : vector<16x32xf32>
    %102 = vector.broadcast %81 : vector<1x32xf32> to vector<16x32xf32>
    %103 = arith.mulf %101, %102 : vector<16x32xf32>
    %104 = vector.broadcast %83 : vector<1x32xf32> to vector<16x32xf32>
    %105 = arith.addf %103, %104 : vector<16x32xf32>
    %106 = arith.truncf %105 : vector<16x32xf32> to vector<16x32xbf16>
    %c0_38 = arith.constant 0 : index
    %c0_39 = arith.constant 0 : index
    %c0_40 = arith.constant 0 : index
    %107 = vector.load %arg7[%c0_38, %c0_39, %c0_40] : memref<1x32x64xbf16, #tpu.memory_space<vmem>>, vector<1x32x64xbf16>
    %108 = vector.shape_cast %107 : vector<1x32x64xbf16> to vector<32x64xbf16>
    %cst_41 = arith.constant dense<0.000000e+00> : vector<16x64xf32>
    %109 = tpu.matmul %106, %108, %cst_41 {dimension_numbers = #tpu.dot_dimension_numbers<[1], [0], [0], [1], [0, 0, 1, 1], [], []>} : vector<16x32xbf16>, vector<32x64xbf16>, vector<16x64xf32> -> vector<16x64xf32>
    %c0_42 = arith.constant 0 : index
    %c0_43 = arith.constant 0 : index
    %c0_44 = arith.constant 0 : index
    %110 = vector.load %arg8[%c0_42, %c0_43, %c0_44] : memref<1x1x64xf32, #tpu.memory_space<vmem>>, vector<1x1x64xf32>
    %111 = vector.shape_cast %110 : vector<1x1x64xf32> to vector<1x64xf32>
    %112 = vector.broadcast %111 : vector<1x64xf32> to vector<16x64xf32>
    %113 = arith.addf %109, %112 : vector<16x64xf32>
    %cst_45 = arith.constant 0.000000e+00 : f32
    %114 = vector.broadcast %cst_45 : f32 to vector<16x64xf32>
    %115 = arith.maximumf %113, %114 : vector<16x64xf32>
    %116 = arith.truncf %115 : vector<16x64xf32> to vector<16x64xbf16>
    %c0_46 = arith.constant 0 : index
    %c0_47 = arith.constant 0 : index
    %c0_48 = arith.constant 0 : index
    %117 = vector.load %arg9[%c0_46, %c0_47, %c0_48] : memref<1x64x32xbf16, #tpu.memory_space<vmem>>, vector<1x64x32xbf16>
    %118 = vector.shape_cast %117 : vector<1x64x32xbf16> to vector<64x32xbf16>
    %cst_49 = arith.constant dense<0.000000e+00> : vector<16x32xf32>
    %119 = tpu.matmul %116, %118, %cst_49 {dimension_numbers = #tpu.dot_dimension_numbers<[1], [0], [0], [1], [0, 0, 1, 1], [], []>} : vector<16x64xbf16>, vector<64x32xbf16>, vector<16x32xf32> -> vector<16x32xf32>
    %c0_50 = arith.constant 0 : index
    %c0_51 = arith.constant 0 : index
    %c0_52 = arith.constant 0 : index
    %120 = vector.load %arg10[%c0_50, %c0_51, %c0_52] : memref<1x1x32xf32, #tpu.memory_space<vmem>>, vector<1x1x32xf32>
    %121 = vector.shape_cast %120 : vector<1x1x32xf32> to vector<1x32xf32>
    %122 = vector.broadcast %121 : vector<1x32xf32> to vector<16x32xf32>
    %123 = arith.addf %119, %122 : vector<16x32xf32>
    %124 = arith.addf %105, %123 : vector<16x32xf32>
    %c0_53 = arith.constant 0 : index
    %c0_54 = arith.constant 0 : index
    %c0_55 = arith.constant 0 : index
    %125 = vector.load %arg13[%c0_53, %c0_54, %c0_55] : memref<1x1x32xf32, #tpu.memory_space<vmem>>, vector<1x1x32xf32>
    %126 = vector.shape_cast %125 : vector<1x1x32xf32> to vector<1x32xf32>
    %c0_56 = arith.constant 0 : index
    %c0_57 = arith.constant 0 : index
    %c0_58 = arith.constant 0 : index
    %127 = vector.load %arg14[%c0_56, %c0_57, %c0_58] : memref<1x1x32xf32, #tpu.memory_space<vmem>>, vector<1x1x32xf32>
    %128 = vector.shape_cast %127 : vector<1x1x32xf32> to vector<1x32xf32>
    %cst_59 = arith.constant dense<0.000000e+00> : vector<16xf32>
    %129 = vector.multi_reduction <add>, %124, %cst_59 [1] : vector<16x32xf32> to vector<16xf32>
    %130 = vector.shape_cast %129 : vector<16xf32> to vector<16x1xf32>
    %cst_60 = arith.constant 3.200000e+01 : f32
    %131 = vector.broadcast %cst_60 : f32 to vector<16x1xf32>
    %132 = arith.divf %130, %131 : vector<16x1xf32>
    %133 = vector.broadcast %132 : vector<16x1xf32> to vector<16x32xf32>
    %134 = arith.subf %124, %133 : vector<16x32xf32>
    %135 = arith.mulf %134, %134 : vector<16x32xf32>
    %cst_61 = arith.constant dense<0.000000e+00> : vector<16xf32>
    %136 = vector.multi_reduction <add>, %135, %cst_61 [1] : vector<16x32xf32> to vector<16xf32>
    %137 = vector.shape_cast %136 : vector<16xf32> to vector<16x1xf32>
    %cst_62 = arith.constant 3.200000e+01 : f32
    %138 = vector.broadcast %cst_62 : f32 to vector<16x1xf32>
    %139 = arith.divf %137, %138 : vector<16x1xf32>
    %140 = vector.broadcast %132 : vector<16x1xf32> to vector<16x32xf32>
    %141 = arith.subf %124, %140 : vector<16x32xf32>
    %cst_63 = arith.constant 9.99999974E-6 : f32
    %142 = vector.broadcast %cst_63 : f32 to vector<16x1xf32>
    %143 = arith.addf %139, %142 : vector<16x1xf32>
    %144 = math.rsqrt %143 : vector<16x1xf32>
    %145 = vector.broadcast %144 : vector<16x1xf32> to vector<16x32xf32>
    %146 = arith.mulf %141, %145 : vector<16x32xf32>
    %147 = vector.broadcast %126 : vector<1x32xf32> to vector<16x32xf32>
    %148 = arith.mulf %146, %147 : vector<16x32xf32>
    %149 = vector.broadcast %128 : vector<1x32xf32> to vector<16x32xf32>
    %150 = arith.addf %148, %149 : vector<16x32xf32>
    %c0_64 = arith.constant 0 : index
    %c0_65 = arith.constant 0 : index
    %151 = vector.load %arg15[%c0_64, %c0_65] : memref<16x32xf32, #tpu.memory_space<vmem>>, vector<16x32xf32>
    tpu.vector_store %arg15[%c0_64, %c0_65], %150 {strides = array<i32>} : memref<16x32xf32, #tpu.memory_space<vmem>>, vector<16x32xf32>,
    return
  }
  func.func @transform_1(%arg0: i32, %arg1: i32) -> (i32, i32, i32) {
    %c0_i32 = arith.constant 0 : i32
    %c0_i32_0 = arith.constant 0 : i32
    %c0_i32_1 = arith.constant 0 : i32
    return %arg1, %c0_i32, %c0_i32_0 : i32, i32, i32
  }
  func.func @transform_2(%arg0: i32, %arg1: i32) -> (i32, i32, i32) {
    %c0_i32 = arith.constant 0 : i32
    %c0_i32_0 = arith.constant 0 : i32
    %c0_i32_1 = arith.constant 0 : i32
    return %arg1, %c0_i32, %c0_i32_0 : i32, i32, i32
  }
  func.func @transform_3(%arg0: i32, %arg1: i32) -> (i32, i32, i32) {
    %c0_i32 = arith.constant 0 : i32
    %c0_i32_0 = arith.constant 0 : i32
    %c0_i32_1 = arith.constant 0 : i32
    return %arg1, %c0_i32, %c0_i32_0 : i32, i32, i32
  }
  func.func @transform_4(%arg0: i32, %arg1: i32) -> (i32, i32, i32) {
    %c0_i32 = arith.constant 0 : i32
    %c0_i32_0 = arith.constant 0 : i32
    %c0_i32_1 = arith.constant 0 : i32
    return %arg1, %c0_i32, %c0_i32_0 : i32, i32, i32
  }
  func.func @transform_5(%arg0: i32, %arg1: i32) -> (i32, i32, i32) {
    %c0_i32 = arith.constant 0 : i32
    %c0_i32_0 = arith.constant 0 : i32
    %c0_i32_1 = arith.constant 0 : i32
    return %arg1, %c0_i32, %c0_i32_0 : i32, i32, i32
  }
  func.func @transform_6(%arg0: i32, %arg1: i32) -> (i32, i32, i32) {
    %c0_i32 = arith.constant 0 : i32
    %c0_i32_0 = arith.constant 0 : i32
    %c0_i32_1 = arith.constant 0 : i32
    return %arg1, %c0_i32, %c0_i32_0 : i32, i32, i32
  }
  func.func @transform_7(%arg0: i32, %arg1: i32) -> (i32, i32, i32) {
    %c0_i32 = arith.constant 0 : i32
    %c0_i32_0 = arith.constant 0 : i32
    %c0_i32_1 = arith.constant 0 : i32
    return %arg1, %c0_i32, %c0_i32_0 : i32, i32, i32
  }
  func.func @transform_8(%arg0: i32, %arg1: i32) -> (i32, i32, i32) {
    %c0_i32 = arith.constant 0 : i32
    %c0_i32_0 = arith.constant 0 : i32
    %c0_i32_1 = arith.constant 0 : i32
    return %arg1, %c0_i32, %c0_i32_0 : i32, i32, i32
  }
  func.func @transform_9(%arg0: i32, %arg1: i32) -> (i32, i32, i32) {
    %c0_i32 = arith.constant 0 : i32
    %c0_i32_0 = arith.constant 0 : i32
    %c0_i32_1 = arith.constant 0 : i32
    return %arg1, %c0_i32, %c0_i32_0 : i32, i32, i32
  }
  func.func @transform_10(%arg0: i32, %arg1: i32) -> (i32, i32, i32) {
    %c0_i32 = arith.constant 0 : i32
    %c0_i32_0 = arith.constant 0 : i32
    %c0_i32_1 = arith.constant 0 : i32
    return %arg1, %c0_i32, %c0_i32_0 : i32, i32, i32
  }
  func.func @transform_11(%arg0: i32, %arg1: i32) -> (i32, i32, i32) {
    %c0_i32 = arith.constant 0 : i32
    %c0_i32_0 = arith.constant 0 : i32
    %c0_i32_1 = arith.constant 0 : i32
    return %arg1, %c0_i32, %c0_i32_0 : i32, i32, i32
  }
  func.func @transform_12(%arg0: i32, %arg1: i32) -> (i32, i32, i32) {
    %c0_i32 = arith.constant 0 : i32
    %c0_i32_0 = arith.constant 0 : i32
    %c0_i32_1 = arith.constant 0 : i32
    return %arg1, %c0_i32, %c0_i32_0 : i32, i32, i32
  }
  func.func @transform_13(%arg0: i32, %arg1: i32) -> (i32, i32) {
    %c0_i32 = arith.constant 0 : i32
    %c0_i32_0 = arith.constant 0 : i32
    return %arg0, %c0_i32 : i32, i32
  }
}

module attributes {stable_mosaic.version = 11 : i64} {
  func.func @decoder_logsoftmax_kernel(%arg0: i32, %arg1: i32, %arg2: i32, %arg3: memref<8x32xbf16, #tpu.memory_space<vmem>>, %arg4: memref<32x128xbf16, #tpu.memory_space<vmem>>, %arg5: memref<1x128xf32, #tpu.memory_space<vmem>>, %arg6: memref<8x128xf32, #tpu.memory_space<vmem>>, %arg7: memref<8x1xf32, #tpu.memory_space<vmem>>, %arg8: memref<8x1xf32, #tpu.memory_space<vmem>>) attributes {dimension_semantics = [#tpu.dimension_semantics<parallel>, #tpu.dimension_semantics<parallel>, #tpu.dimension_semantics<arbitrary>], iteration_bounds = array<i64: 2, 1, 2>, scalar_prefetch = 0 : i64, scratch_operands = 2 : i64, tpu.core_type = #tpu.core_type<tc>, window_params = [{transform_indices = @transform_0, window_bounds = array<i64: 8, 32>}, {transform_indices = @transform_1, window_bounds = array<i64: 32, 128>}, {transform_indices = @transform_2, window_bounds = array<i64: 1, 128>}, {transform_indices = @transform_3, window_bounds = array<i64: 8, 128>}]} {
    %c0_i32 = arith.constant 0 : i32
    %0 = arith.cmpi eq, %arg2, %c0_i32 : i32
    %1 = arith.extui %0 : i1 to i32
    %c0_i32_0 = arith.constant 0 : i32
    %2 = arith.cmpi ne, %1, %c0_i32_0 : i32
    scf.if %2 {
      %cst_9 = arith.constant -1.000000e+30 : f32
      %15 = vector.broadcast %cst_9 : f32 to vector<8x1xf32>
      %c0_10 = arith.constant 0 : index
      %c0_11 = arith.constant 0 : index
      %16 = vector.load %arg7[%c0_10, %c0_11] : memref<8x1xf32, #tpu.memory_space<vmem>>, vector<8x1xf32>
      tpu.vector_store %arg7[%c0_10, %c0_11], %15 {strides = array<i32>} : memref<8x1xf32, #tpu.memory_space<vmem>>, vector<8x1xf32>,
      %cst_12 = arith.constant 0.000000e+00 : f32
      %17 = vector.broadcast %cst_12 : f32 to vector<8x1xf32>
      %c0_13 = arith.constant 0 : index
      %c0_14 = arith.constant 0 : index
      %18 = vector.load %arg8[%c0_13, %c0_14] : memref<8x1xf32, #tpu.memory_space<vmem>>, vector<8x1xf32>
      tpu.vector_store %arg8[%c0_13, %c0_14], %17 {strides = array<i32>} : memref<8x1xf32, #tpu.memory_space<vmem>>, vector<8x1xf32>,
    } else {
    }
    %c0 = arith.constant 0 : index
    %c0_1 = arith.constant 0 : index
    %3 = vector.load %arg3[%c0, %c0_1] : memref<8x32xbf16, #tpu.memory_space<vmem>>, vector<8x32xbf16>
    %c0_2 = arith.constant 0 : index
    %c0_3 = arith.constant 0 : index
    %4 = vector.load %arg4[%c0_2, %c0_3] : memref<32x128xbf16, #tpu.memory_space<vmem>>, vector<32x128xbf16>
    %cst = arith.constant dense<0.000000e+00> : vector<8x128xf32>
    %5 = tpu.matmul %3, %4, %cst {dimension_numbers = #tpu.dot_dimension_numbers<[1], [0], [0], [1], [0, 0, 1, 1], [], []>} : vector<8x32xbf16>, vector<32x128xbf16>, vector<8x128xf32> -> vector<8x128xf32>
    %c0_4 = arith.constant 0 : index
    %c0_5 = arith.constant 0 : index
    %6 = vector.load %arg5[%c0_4, %c0_5] : memref<1x128xf32, #tpu.memory_space<vmem>>, vector<1x128xf32>
    %7 = vector.broadcast %6 : vector<1x128xf32> to vector<8x128xf32>
    %8 = arith.addf %5, %7 : vector<8x128xf32>
    %c1_i32 = arith.constant 1 : i32
    %9 = arith.cmpi slt, %arg2, %c1_i32 : i32
    %10 = arith.extui %9 : i1 to i32
    %c0_i32_6 = arith.constant 0 : i32
    %11 = arith.cmpi ne, %10, %c0_i32_6 : i32
    scf.if %11 {
      %c0_9 = arith.constant 0 : index
      %c0_10 = arith.constant 0 : index
      %15 = vector.load %arg7[%c0_9, %c0_10] : memref<8x1xf32, #tpu.memory_space<vmem>>, vector<8x1xf32>
      %cst_11 = arith.constant dense<0xFF800000> : vector<8xf32>
      %16 = vector.multi_reduction <maximumf>, %8, %cst_11 [1] : vector<8x128xf32> to vector<8xf32>
      %17 = vector.shape_cast %16 : vector<8xf32> to vector<8x1xf32>
      %18 = arith.maximumf %15, %17 : vector<8x1xf32>
      %c0_12 = arith.constant 0 : index
      %c0_13 = arith.constant 0 : index
      %19 = vector.load %arg8[%c0_12, %c0_13] : memref<8x1xf32, #tpu.memory_space<vmem>>, vector<8x1xf32>
      %20 = arith.subf %15, %18 : vector<8x1xf32>
      %21 = math.exp %20 : vector<8x1xf32>
      %22 = arith.mulf %19, %21 : vector<8x1xf32>
      %23 = vector.broadcast %18 : vector<8x1xf32> to vector<8x128xf32>
      %24 = arith.subf %8, %23 : vector<8x128xf32>
      %25 = math.exp %24 : vector<8x128xf32>
      %cst_14 = arith.constant dense<0.000000e+00> : vector<8xf32>
      %26 = vector.multi_reduction <add>, %25, %cst_14 [1] : vector<8x128xf32> to vector<8xf32>
      %27 = vector.shape_cast %26 : vector<8xf32> to vector<8x1xf32>
      %28 = arith.addf %22, %27 : vector<8x1xf32>
      %c0_15 = arith.constant 0 : index
      %c0_16 = arith.constant 0 : index
      %29 = vector.load %arg8[%c0_15, %c0_16] : memref<8x1xf32, #tpu.memory_space<vmem>>, vector<8x1xf32>
      tpu.vector_store %arg8[%c0_15, %c0_16], %28 {strides = array<i32>} : memref<8x1xf32, #tpu.memory_space<vmem>>, vector<8x1xf32>,
      %c0_17 = arith.constant 0 : index
      %c0_18 = arith.constant 0 : index
      %30 = vector.load %arg7[%c0_17, %c0_18] : memref<8x1xf32, #tpu.memory_space<vmem>>, vector<8x1xf32>
      tpu.vector_store %arg7[%c0_17, %c0_18], %18 {strides = array<i32>} : memref<8x1xf32, #tpu.memory_space<vmem>>, vector<8x1xf32>,
    } else {
    }
    %c1_i32_7 = arith.constant 1 : i32
    %12 = arith.cmpi sge, %arg2, %c1_i32_7 : i32
    %13 = arith.extui %12 : i1 to i32
    %c0_i32_8 = arith.constant 0 : i32
    %14 = arith.cmpi ne, %13, %c0_i32_8 : i32
    scf.if %14 {
      %c0_9 = arith.constant 0 : index
      %c0_10 = arith.constant 0 : index
      %15 = vector.load %arg7[%c0_9, %c0_10] : memref<8x1xf32, #tpu.memory_space<vmem>>, vector<8x1xf32>
      %c0_11 = arith.constant 0 : index
      %c0_12 = arith.constant 0 : index
      %16 = vector.load %arg8[%c0_11, %c0_12] : memref<8x1xf32, #tpu.memory_space<vmem>>, vector<8x1xf32>
      %17 = math.log %16 : vector<8x1xf32>
      %18 = arith.addf %15, %17 : vector<8x1xf32>
      %19 = vector.broadcast %18 : vector<8x1xf32> to vector<8x128xf32>
      %20 = arith.subf %8, %19 : vector<8x128xf32>
      %c0_13 = arith.constant 0 : index
      %c0_14 = arith.constant 0 : index
      %21 = vector.load %arg6[%c0_13, %c0_14] : memref<8x128xf32, #tpu.memory_space<vmem>>, vector<8x128xf32>
      tpu.vector_store %arg6[%c0_13, %c0_14], %20 {strides = array<i32>} : memref<8x128xf32, #tpu.memory_space<vmem>>, vector<8x128xf32>,
    } else {
    }
    return
  }
  func.func @transform_0(%arg0: i32, %arg1: i32, %arg2: i32) -> (i32, i32) {
    %c1_i32 = arith.constant 1 : i32
    %0 = arith.muli %arg0, %c1_i32 : i32
    %1 = arith.addi %0, %arg1 : i32
    %c0_i32 = arith.constant 0 : i32
    %c0_i32_0 = arith.constant 0 : i32
    return %1, %c0_i32 : i32, i32
  }
  func.func @transform_1(%arg0: i32, %arg1: i32, %arg2: i32) -> (i32, i32) {
    %c1_i32 = arith.constant 1 : i32
    %0 = arith.cmpi slt, %arg2, %c1_i32 : i32
    %c1_i32_0 = arith.constant 1 : i32
    %1 = arith.subi %arg2, %c1_i32_0 : i32
    %2 = arith.select %0, %arg2, %1 : i32
    %c0_i32 = arith.constant 0 : i32
    %c0_i32_1 = arith.constant 0 : i32
    return %c0_i32, %2 : i32, i32
  }
  func.func @transform_2(%arg0: i32, %arg1: i32, %arg2: i32) -> (i32, i32) {
    %c1_i32 = arith.constant 1 : i32
    %0 = arith.cmpi slt, %arg2, %c1_i32 : i32
    %c1_i32_0 = arith.constant 1 : i32
    %1 = arith.subi %arg2, %c1_i32_0 : i32
    %2 = arith.select %0, %arg2, %1 : i32
    %c0_i32 = arith.constant 0 : i32
    %c0_i32_1 = arith.constant 0 : i32
    return %c0_i32, %2 : i32, i32
  }
  func.func @transform_3(%arg0: i32, %arg1: i32, %arg2: i32) -> (i32, i32) {
    %c1_i32 = arith.constant 1 : i32
    %0 = arith.muli %arg0, %c1_i32 : i32
    %c1_i32_0 = arith.constant 1 : i32
    %1 = arith.subi %arg2, %c1_i32_0 : i32
    %c0_i32 = arith.constant 0 : i32
    %2 = arith.maxsi %1, %c0_i32 : i32
    %3 = arith.addi %0, %2 : i32
    %c0_i32_1 = arith.constant 0 : i32
    return %arg1, %3 : i32, i32
  }
}

</mosaic_0001>

<llo_original>
// kernel: transformer_forward.3
$region0: #{transformer_forward.3}
  #allocation0 [shape = 'u32[]', space=smem, size = 0x4, offset = 0x4, fixed_abs, tag = 'smem constant byte address 0x4 - core index']
  #allocation1 [shape = 'u32[72,128]{1,0:T(1,128)}', space=vmem, size = 0x9000, scoped, tag = 'internal scratch']
  #allocation2 [shape = 'f32[8,1]{1,0:T(8,128)}', space=vmem, size = 0x1000, scoped, tag = 'scratch operand']
  #allocation3 [shape = 'f32[8,1]{1,0:T(8,128)}', space=vmem, size = 0x1000, scoped, tag = 'scratch operand']
  %s0 = inlined_call_operand.vmem [shape: bf16[16,32], index: 0, kind: input, shape index: {}]
  %s1 = inlined_call_operand.vmem [shape: bf16[32,128], index: 1, kind: input, shape index: {}]
  %s2 = inlined_call_operand.vmem [shape: f32[1,128], index: 2, kind: input, shape index: {}]
  %s3 = inlined_call_operand.vmem [shape: f32[8,256], index: 3, kind: output, shape index: {}]
  %s4 = sld [smem:[#allocation0]]
  $region57: #{transformer_forward.3} parent=0
    _
  %s6 = ssub.s32 1, %s4
  %s7 = scalar_select 0, %s6, %s4
  loop: start=0, step=1, limit=6
  $region2: #{transformer_forward.3} parent=0 // loop_pre_header
    _
  $region3: #{transformer_forward.3} parent=0 // loop_header
    %s9 = sphi 0, %s13
    %p10 = scmp.ge.s32.totalorder %s9, 6
    %s16 = sphi 0, %s35
    %s17 = sphi 0, %s31
    %s18 = sphi 0, %s27
    %s19 = sphi 0, %s16
    %s20 = sphi 0, %s17
    %s21 = sphi 0, %s18
    %s22 = sphi 0, %s19
    %s23 = sphi 0, %s20
    %s24 = sphi 0, %s21
    %s40 = sphi 0, %s42
    %s43 = sphi 0, %s40
    %s44 = sphi 0, %s43
    %s60 = sphi 0, %s44
    %s72 = sphi 0, %s74
    %s75 = sphi 0, %s72
    %s76 = sphi 0, %s75
    %s92 = sphi 0, %s76
    %s104 = sphi 0, %s106
    %s107 = sphi 0, %s104
    %s108 = sphi 0, %s107
    %s124 = sphi 0, %s108
    %s140 = sphi 0, %s142
    %s143 = sphi 0, %s140
    %s144 = sphi 0, %s143
    %s160 = sphi 0, %s144
  $region4: #{transformer_forward.3} parent=0 // loop_header_branch
    %12 = sbr.rel (%p10) target = $region8
  $region5: #{transformer_forward.3} parent=0 // loop_body
    %s14 = ssub.s32 %s9, 1
    %s15 = ssub.s32 %s9, 2
    %s25 = sadd.s32 1, %s18
    %p26 = scmp.ge.s32.totalorder %s25, 2
    %s27 = scalar_select %p26, 0, %s25
    %s28 = sadd.s32 1, %s17
    %s29 = scalar_select %p26, %s28, %s17
    %p30 = scmp.ge.s32.totalorder %s29, 1
    %s31 = scalar_select %p30, 0, %s29
    %s32 = sadd.s32 1, %s16
    %s33 = scalar_select %p30, %s32, %s16
    %p34 = scmp.ge.s32.totalorder %s33, 2
    %s35 = scalar_select %p34, 0, %s33
    %s36 = sadd.s32 %s16, %s17
    %s37 = sadd.s32 %s35, %s31
    %s38 = ssub.s32 %s36, %s37
    %p39 = scmp.eq.s32.totalorder %s38, 0
    %s41 = sadd.s32 %s40, 1
    %s42 = scalar_select %p39, %s40, %s41
    %p45 = pneg %p39
    %p46 = scmp.eq.s32.totalorder %s9, 3
    %p47 = por %p45, %p46
    %p48 = scmp.ne.s32.totalorder %s40, %s43
    %p49 = scmp.eq.s32.totalorder %s9, 0
    %p50 = por %p48, %p49
    %p51 = scmp.ne.s32.totalorder %s40, %s43
    %p52 = scmp.eq.s32.totalorder %s14, 3
    %p53 = por %p51, %p52
    %p54 = scmp.ne.s32.totalorder %s43, %s44
    %p55 = scmp.eq.s32.totalorder %s14, 0
    %p56 = por %p54, %p55
    %p57 = scmp.ne.s32.totalorder %s43, %s44
    %p58 = scmp.eq.s32.totalorder %s15, 3
    %p59 = por %p57, %p58
    %p61 = scmp.ne.s32.totalorder %s44, %s60
    %p62 = scmp.eq.s32.totalorder %s15, 0
    %p63 = por %p61, %p62
    %p64 = scmp.lt.s32.totalorder %s18, 1
    %s65 = ssub.s32 %s18, 1
    %s66 = scalar_select %p64, %s18, %s65
    %p67 = scmp.lt.s32.totalorder %s27, 1
    %s68 = ssub.s32 %s27, 1
    %s69 = scalar_select %p67, %s27, %s68
    %s70 = ssub.s32 %s66, %s69
    %p71 = scmp.eq.s32.totalorder %s70, 0
    %s73 = sadd.s32 %s72, 1
    %s74 = scalar_select %p71, %s72, %s73
    %p77 = pneg %p71
    %p78 = scmp.eq.s32.totalorder %s9, 3
    %p79 = por %p77, %p78
    %p80 = scmp.ne.s32.totalorder %s72, %s75
    %p81 = scmp.eq.s32.totalorder %s9, 0
    %p82 = por %p80, %p81
    %p83 = scmp.ne.s32.totalorder %s72, %s75
    %p84 = scmp.eq.s32.totalorder %s14, 3
    %p85 = por %p83, %p84
    %p86 = scmp.ne.s32.totalorder %s75, %s76
    %p87 = scmp.eq.s32.totalorder %s14, 0
    %p88 = por %p86, %p87
    %p89 = scmp.ne.s32.totalorder %s75, %s76
    %p90 = scmp.eq.s32.totalorder %s15, 3
    %p91 = por %p89, %p90
    %p93 = scmp.ne.s32.totalorder %s76, %s92
    %p94 = scmp.eq.s32.totalorder %s15, 0
    %p95 = por %p93, %p94
    %p96 = scmp.lt.s32.totalorder %s18, 1
    %s97 = ssub.s32 %s18, 1
    %s98 = scalar_select %p96, %s18, %s97
    %p99 = scmp.lt.s32.totalorder %s27, 1
    %s100 = ssub.s32 %s27, 1
    %s101 = scalar_select %p99, %s27, %s100
    %s102 = ssub.s32 %s98, %s101
    %p103 = scmp.eq.s32.totalorder %s102, 0
    %s105 = sadd.s32 %s104, 1
    %s106 = scalar_select %p103, %s104, %s105
    %p109 = pneg %p103
    %p110 = scmp.eq.s32.totalorder %s9, 3
    %p111 = por %p109, %p110
    %p112 = scmp.ne.s32.totalorder %s104, %s107
    %p113 = scmp.eq.s32.totalorder %s9, 0
    %p114 = por %p112, %p113
    %p115 = scmp.ne.s32.totalorder %s104, %s107
    %p116 = scmp.eq.s32.totalorder %s14, 3
    %p117 = por %p115, %p116
    %p118 = scmp.ne.s32.totalorder %s107, %s108
    %p119 = scmp.eq.s32.totalorder %s14, 0
    %p120 = por %p118, %p119
    %p121 = scmp.ne.s32.totalorder %s107, %s108
    %p122 = scmp.eq.s32.totalorder %s15, 3
    %p123 = por %p121, %p122
    %p125 = scmp.ne.s32.totalorder %s108, %s124
    %p126 = scmp.eq.s32.totalorder %s15, 0
    %p127 = por %p125, %p126
    %s128 = ssub.s32 %s18, 1
    %p129 = scmp.gt.s32.totalorder %s128, 0
    %s130 = scalar_select %p129, %s128, 0
    %s131 = sadd.s32 %s16, %s130
    %s132 = ssub.s32 %s27, 1
    %p133 = scmp.gt.s32.totalorder %s132, 0
    %s134 = scalar_select %p133, %s132, 0
    %s135 = sadd.s32 %s35, %s134
    %s136 = ssub.s32 %s17, %s31
    %s137 = ssub.s32 %s131, %s135
    %s138 = sor.u32 %s136, %s137
    %p139 = scmp.eq.s32.totalorder %s138, 0
    %s141 = sadd.s32 %s140, 1
    %s142 = scalar_select %p139, %s140, %s141
    %p145 = pneg %p139
    %p146 = scmp.eq.s32.totalorder %s9, 3
    %p147 = por %p145, %p146
    %p148 = scmp.ne.s32.totalorder %s140, %s143
    %p149 = scmp.eq.s32.totalorder %s9, 0
    %p150 = por %p148, %p149
    %p151 = scmp.ne.s32.totalorder %s140, %s143
    %p152 = scmp.eq.s32.totalorder %s14, 3
    %p153 = por %p151, %p152
    %p154 = scmp.ne.s32.totalorder %s143, %s144
    %p155 = scmp.eq.s32.totalorder %s14, 0
    %p156 = por %p154, %p155
    %p157 = scmp.ne.s32.totalorder %s143, %s144
    %p158 = scmp.eq.s32.totalorder %s15, 3
    %p159 = por %p157, %p158
    %p161 = scmp.ne.s32.totalorder %s144, %s160
    %p162 = scmp.eq.s32.totalorder %s15, 0
    %p163 = por %p161, %p162
    %p164 = scmp.le.s32.totalorder 1, %s9
    %p165 = scmp.lt.s32.totalorder %s9, 5
    %p166 = pnand %p164, %p165
    %p167 = pneg %p166
    // Predicated region
    $region9: #{transformer_forward.3} parent=5 // pred_check
      _
    $region10: #{transformer_forward.3} parent=5 // pred_check_branch
      %169 = sbr.rel (%p166) target = $region12
    $region11: #{transformer_forward.3} parent=5 // pred_region
      %s170 = ssub.s32 %s9, 1
    $region12: #{transformer_forward.3} parent=5 // pred_fallthru
      _
    %p171 = scmp.lt.s32.totalorder %s9, 4
    // Predicated region
    $region13: #{transformer_forward.3} parent=5 // pred_check
      %p172 = pneg %p171
    $region14: #{transformer_forward.3} parent=5 // pred_check_branch
      %174 = sbr.rel (%p172) target = $region16
    $region15: #{transformer_forward.3} parent=5 // pred_region
      // Predicated region
      $region17: #{transformer_forward.3} parent=15 // pred_check
        %p175 = pneg %p50
      $region18: #{transformer_forward.3} parent=15 // pred_check_branch
        %177 = sbr.rel (%p175) target = $region20
      $region19: #{transformer_forward.3} parent=15 // pred_region
        %s178 = sadd.s32 %s16, %s17
        %p179 = scmp.lt.s32.totalorder %s178, 1
        %s180 = scalar_select %p179, %s178, 1
        %s181 = smul.addr %s180, 4
        %s182 = scalar_lea.vmem %s0, %s181
        %s183 = sadd.s32 %s16, %s17
      $region20: #{transformer_forward.3} parent=15 // pred_fallthru
        _
      // Predicated region
      $region21: #{transformer_forward.3} parent=15 // pred_check
        %p184 = pneg %p82
      $region22: #{transformer_forward.3} parent=15 // pred_check_branch
        %186 = sbr.rel (%p184) target = $region24
      $region23: #{transformer_forward.3} parent=15 // pred_region
        %p187 = scmp.lt.s32.totalorder %s18, 1
        %s188 = ssub.s32 %s18, 1
        %s189 = scalar_select %p187, %s18, %s188
        %p190 = scmp.lt.s32.totalorder %s189, 0
        %s191 = scalar_select %p190, %s189, 0
        %s192 = smul.addr %s191, 4
        %s193 = scalar_lea.vmem %s1, %s192
        %p194 = scmp.lt.s32.totalorder %s18, 1
        %s195 = ssub.s32 %s18, 1
        %s196 = scalar_select %p194, %s18, %s195
      $region24: #{transformer_forward.3} parent=15 // pred_fallthru
        _
      // Predicated region
      $region25: #{transformer_forward.3} parent=15 // pred_check
        %p197 = pneg %p114
      $region26: #{transformer_forward.3} parent=15 // pred_check_branch
        %199 = sbr.rel (%p197) target = $region28
      $region27: #{transformer_forward.3} parent=15 // pred_region
        %p200 = scmp.lt.s32.totalorder %s18, 1
        %s201 = ssub.s32 %s18, 1
        %s202 = scalar_select %p200, %s18, %s201
        %p203 = scmp.lt.s32.totalorder %s202, 0
        %s204 = scalar_select %p203, %s202, 0
        %s205 = scalar_lea.vmem %s2, %s204
        %p206 = scmp.lt.s32.totalorder %s18, 1
        %s207 = ssub.s32 %s18, 1
        %s208 = scalar_select %p206, %s18, %s207
      $region28: #{transformer_forward.3} parent=15 // pred_fallthru
        _
    $region16: #{transformer_forward.3} parent=5 // pred_fallthru
      _
    %p209 = scmp.le.s32.totalorder 1, %s9
    %p210 = scmp.lt.s32.totalorder %s9, 5
    %p211 = pnand %p209, %p210
    %p212 = pneg %p211
    // Predicated region
    $region29: #{transformer_forward.3} parent=5 // pred_check
      _
    $region30: #{transformer_forward.3} parent=5 // pred_check_branch
      %214 = sbr.rel (%p211) target = $region32
    $region31: #{transformer_forward.3} parent=5 // pred_region
      %s215 = ssub.s32 %s9, 1
      %s216 = sadd.s32 %s19, %s20
      %p217 = scmp.lt.s32.totalorder %s216, 1
      %s218 = scalar_select %p217, %s216, 1
      %s219 = smul.addr %s218, 4
      %s220 = scalar_lea.vmem %s0, %s219
      %p221 = pneg %p56
      %p222 = pneg %p53
      %p223 = scmp.lt.s32.totalorder %s21, 1
      %s224 = ssub.s32 %s21, 1
      %s225 = scalar_select %p223, %s21, %s224
      %p226 = scmp.lt.s32.totalorder %s225, 0
      %s227 = scalar_select %p226, %s225, 0
      %s228 = smul.addr %s227, 4
      %s229 = scalar_lea.vmem %s1, %s228
      %p230 = pneg %p88
      %p231 = pneg %p85
      %p232 = scmp.lt.s32.totalorder %s21, 1
      %s233 = ssub.s32 %s21, 1
      %s234 = scalar_select %p232, %s21, %s233
      %p235 = scmp.lt.s32.totalorder %s234, 0
      %s236 = scalar_select %p235, %s234, 0
      %s237 = scalar_lea.vmem %s2, %s236
      %p238 = pneg %p120
      %p239 = pneg %p117
      %p240 = pneg %p156
      %p241 = pneg %p153
      %s242 = ssub.s32 %s21, 1
      %p243 = scmp.gt.s32.totalorder %s242, 0
      %s244 = scalar_select %p243, %s242, 0
      %s245 = sadd.s32 %s19, %s244
      %p246 = scmp.lt.s32.totalorder %s20, 0
      %s247 = scalar_select %p246, %s20, 0
      %p248 = scmp.lt.s32.totalorder %s245, 1
      %s249 = scalar_select %p248, %s245, 1
      %s250 = smul.addr %s247, 2
      %s251 = sadd.s32 %s249, %s250
      %s252 = smul.addr %s251, 8
      %s253 = scalar_lea.vmem %s3, %s252
      %s254 = sadd.s32 %s19, %s20
      %p255 = scmp.lt.s32.totalorder %s254, 1
      %s256 = scalar_select %p255, %s254, 1
      %s257 = smul.addr %s256, 4
      %s258 = scalar_lea.vmem %s0, %s257
      %s259 = sadd.s32 %s19, %s20
      %p260 = scmp.lt.s32.totalorder %s21, 1
      %s261 = ssub.s32 %s21, 1
      %s262 = scalar_select %p260, %s21, %s261
      %p263 = scmp.lt.s32.totalorder %s262, 0
      %s264 = scalar_select %p263, %s262, 0
      %s265 = smul.addr %s264, 4
      %s266 = scalar_lea.vmem %s1, %s265
      %p267 = scmp.lt.s32.totalorder %s21, 1
      %s268 = ssub.s32 %s21, 1
      %s269 = scalar_select %p267, %s21, %s268
      %p270 = scmp.lt.s32.totalorder %s21, 1
      %s271 = ssub.s32 %s21, 1
      %s272 = scalar_select %p270, %s21, %s271
      %p273 = scmp.lt.s32.totalorder %s272, 0
      %s274 = scalar_select %p273, %s272, 0
      %s275 = scalar_lea.vmem %s2, %s274
      %p276 = scmp.lt.s32.totalorder %s21, 1
      %s277 = ssub.s32 %s21, 1
      %s278 = scalar_select %p276, %s21, %s277
      %s279 = ssub.s32 %s21, 1
      %p280 = scmp.gt.s32.totalorder %s279, 0
      %s281 = scalar_select %p280, %s279, 0
      %s282 = sadd.s32 %s19, %s281
      %p283 = scmp.lt.s32.totalorder %s20, 0
      %s284 = scalar_select %p283, %s20, 0
      %p285 = scmp.lt.s32.totalorder %s282, 1
      %s286 = scalar_select %p285, %s282, 1
      %s287 = smul.addr %s284, 2
      %s288 = sadd.s32 %s286, %s287
      %s289 = smul.addr %s288, 8
      %s290 = scalar_lea.vmem %s3, %s289
      %s291 = ssub.s32 %s21, 1
      %p292 = scmp.gt.s32.totalorder %s291, 0
      %s293 = scalar_select %p292, %s291, 0
      %s294 = sadd.s32 %s19, %s293
      %p296 = scmp.eq.s32.totalorder %s21, 0
      // Predicated region
      $region33: #{transformer_forward.3} parent=31 // pred_check
        %p297 = pneg %p296
      $region34: #{transformer_forward.3} parent=31 // pred_check_branch
        %299 = sbr.rel (%p297) target = $region36
      $region35: #{transformer_forward.3} parent=31 // pred_region
        %vm300 = vcmask 7168
        %301 = vst.msk [vmem:[#allocation2] sm:$0xff] %vm300, -1e+30
        %302 = vst.msk [vmem:[#allocation3] sm:$0xff] %vm300, 0.0
      $region36: #{transformer_forward.3} parent=31 // pred_fallthru
        _
      %v303 = vld [vmem:[%s258] sm:$0xf]
      %v304 = vld [vmem:[%s266] sm:$0xf]
      %v305 = vld [vmem:[%s266 + $0x4] sm:$0xf]
      %v306 = vld [vmem:[%s266 + $0x8] sm:$0xf]
      %v307 = vld [vmem:[%s266 + $0xc] sm:$0xf]
      %v308 = vld [vmem:[%s275] sm:$0x1]
      %v310 = vperm.slane %v308, 0
      %v316 = vunpack.c.l.b16 %v304
      %v317 = vunpack.c.l.b16 %v305
      %v318 = vunpack.c.l.b16 %v306
      %v319 = vunpack.c.l.b16 %v307
      %v320 = vpack.c.b16 %v317, %v316
      %v321 = vpack.c.b16 %v319, %v318
      %vm324 = vcmask 261120
      %v326 = vsel %vm324, %v303, 0
      %328 = vmatpush.bf16.msra.mxu0 0
      %329 = vmatpush.bf16.msra.mxu0 0
      %330 = vmatpush.bf16.msra.mxu0 0
      %331 = vmatpush.bf16.msra.mxu0 0
      %332 = vmatpush.bf16.msra.mxu0 0
      %333 = vmatpush.bf16.msra.mxu0 0
      %334 = vmatpush.bf16.msra.mxu0 %v321
      %335 = vmatpush.bf16.msra.mxu0 %v320
      %336 = vmatmul.bf16.gmra.mxu0 %v326
      %v337 = vpop.f32.mrf.mxu0
      %v338 = vadd.f32 %v310, %v337
      %v339 = vpop.f32.mrf.mxu0
      %340 = vdwg.mxu0
      %p341 = scmp.lt.s32.totalorder %s21, 1
      // Predicated region
      $region37: #{transformer_forward.3} parent=31 // pred_check
        %p342 = pneg %p341
      $region38: #{transformer_forward.3} parent=31 // pred_check_branch
        %344 = sbr.rel (%p342) target = $region40
      $region39: #{transformer_forward.3} parent=31 // pred_region
        %v345 = vld [vmem:[#allocation2] sm:$0xff]
        %346 = vmax.xlane.f32.xlu0 %v338
        %v347 = vpop.xlane.xlu0 %346
        %v348 = vmax.f32 %v345, %v347
        %v349 = vld [vmem:[#allocation3] sm:$0xff]
        %v350 = vsub.f32 %v345, %v348
        %v351 = vmul.f32 %v350, 1.442695
        %v352 = vpow.pop %v351
        %v353 = vmul.f32 %v349, %v352
        %355 = vset.pattern.permute.xlu0 0
        %356 = vperm.xlu0 %355, %v348
        %v357 = vpop.permute.xlu0 %356
        %v359 = vsub.f32 %v338, %v357
        %v360 = vmul.f32 %v359, 1.442695
        %v361 = vpow.pop %v360
        %362 = vadd.xlane.f32.xlu0 %v361
        %v363 = vpop.xlane.xlu0 %362
        %v364 = vadd.f32 %v353, %v363
        %vm365 = vcmask 7168
        %366 = vst.msk [vmem:[#allocation3] sm:$0xff] %vm365, %v364
        %367 = vst.msk [vmem:[#allocation2] sm:$0xff] %vm365, %v348
      $region40: #{transformer_forward.3} parent=31 // pred_fallthru
        _
      %p368 = scmp.ge.s32.totalorder %s21, 1
      // Predicated region
      $region41: #{transformer_forward.3} parent=31 // pred_check
        %p369 = pneg %p368
      $region42: #{transformer_forward.3} parent=31 // pred_check_branch
        %371 = sbr.rel (%p369) target = $region44
      $region43: #{transformer_forward.3} parent=31 // pred_region
        %v372 = vld [vmem:[#allocation2] sm:$0xff]
        %v373 = vld [vmem:[#allocation3] sm:$0xff]
        %v374 = vlog2.pop %v373
        %v375 = vmul.f32 %v374, 0.6931472
        %v376 = vadd.f32 %v372, %v375
        %378 = vset.pattern.permute.xlu0 0
        %379 = vperm.xlu0 %378, %v376
        %v380 = vpop.permute.xlu0 %379
        %v382 = vsub.f32 %v338, %v380
        %383 = vst [vmem:[%s290] sm:$0xff] %v382
      $region44: #{transformer_forward.3} parent=31 // pred_fallthru
        _
      %s384 = ssub.s32 %s21, 1
      %p385 = scmp.gt.s32.totalorder %s384, 0
      %s386 = scalar_select %p385, %s384, 0
      %s387 = sadd.s32 %s19, %s386
      %p388 = scmp.lt.s32.totalorder %s20, 0
      %s389 = scalar_select %p388, %s20, 0
      %p390 = scmp.lt.s32.totalorder %s387, 1
      %s391 = scalar_select %p390, %s387, 1
      %s392 = smul.addr %s389, 2
      %s393 = sadd.s32 %s391, %s392
      %s394 = smul.addr %s393, 8
      %s395 = scalar_lea.vmem %s3, %s394
      // Predicated region
      $region45: #{transformer_forward.3} parent=31 // pred_check
        %p396 = pneg %p153
      $region46: #{transformer_forward.3} parent=31 // pred_check_branch
        %398 = sbr.rel (%p396) target = $region48
      $region47: #{transformer_forward.3} parent=31 // pred_region
        %s399 = ssub.s32 %s21, 1
        %p400 = scmp.gt.s32.totalorder %s399, 0
        %s401 = scalar_select %p400, %s399, 0
        %s402 = sadd.s32 %s19, %s401
      $region48: #{transformer_forward.3} parent=31 // pred_fallthru
        _
    $region32: #{transformer_forward.3} parent=5 // pred_fallthru
      _
    %p403 = scmp.le.s32.totalorder 2, %s9
    // Predicated region
    $region49: #{transformer_forward.3} parent=5 // pred_check
      %p404 = pneg %p403
    $region50: #{transformer_forward.3} parent=5 // pred_check_branch
      %406 = sbr.rel (%p404) target = $region52
    $region51: #{transformer_forward.3} parent=5 // pred_region
      %s407 = ssub.s32 %s9, 2
      // Predicated region
      $region53: #{transformer_forward.3} parent=51 // pred_check
        %p408 = pneg %p159
      $region54: #{transformer_forward.3} parent=51 // pred_check_branch
        %410 = sbr.rel (%p408) target = $region56
      $region55: #{transformer_forward.3} parent=51 // pred_region
        %s411 = ssub.s32 %s24, 1
        %p412 = scmp.gt.s32.totalorder %s411, 0
        %s413 = scalar_select %p412, %s411, 0
        %s414 = sadd.s32 %s22, %s413
        %p415 = scmp.lt.s32.totalorder %s23, 0
        %s416 = scalar_select %p415, %s23, 0
        %p417 = scmp.lt.s32.totalorder %s414, 1
        %s418 = scalar_select %p417, %s414, 1
        %s419 = smul.addr %s416, 2
        %s420 = sadd.s32 %s418, %s419
        %s421 = smul.addr %s420, 8
        %s422 = scalar_lea.vmem %s3, %s421
      $region56: #{transformer_forward.3} parent=51 // pred_fallthru
        _
    $region52: #{transformer_forward.3} parent=5 // pred_fallthru
      _
  $region6: #{transformer_forward.3} parent=0 // loop_footer
    %s13 = sadd.s32 1, %s9
  $region7: #{transformer_forward.3} parent=0 // loop_footer_branch
    %8 = sbr.rel target = $region3
  $region8: #{transformer_forward.3} parent=0 // loop_exit
    _

// kernel: transformer_forward.2
$region0: #{transformer_forward.2}
  #allocation0 [shape = 'u32[]', space=smem, size = 0x4, offset = 0x4, fixed_abs, tag = 'smem constant byte address 0x4 - core index']
  #allocation1 [shape = 'u32[72,128]{1,0:T(1,128)}', space=vmem, size = 0x9000, scoped, tag = 'internal scratch']
  #allocation2 [shape = 's32[1]{0}', space=sflag, size = 0x4, scoped, tag = 'scratch operand']
  #allocation3 [shape = 's32[]', space=sflag, size = 0x4, offset = 0, fixed_abs, tag = 'sflag constant byte address 0x0 - dummy sync flag']
  %s0 = inlined_call_operand.vmem [shape: f32[16,32], index: 0, kind: input, shape index: {}]
  %s1 = inlined_call_operand.vmem [shape: bf16[2,32,96], index: 1, kind: input, shape index: {}]
  %s2 = inlined_call_operand.vmem [shape: f32[2,1,96], index: 2, kind: input, shape index: {}]
  %s3 = inlined_call_operand.vmem [shape: bf16[2,32,32], index: 3, kind: input, shape index: {}]
  %s4 = inlined_call_operand.vmem [shape: f32[2,1,32], index: 4, kind: input, shape index: {}]
  %s5 = inlined_call_operand.vmem [shape: bf16[2,32,64], index: 5, kind: input, shape index: {}]
  %s6 = inlined_call_operand.vmem [shape: f32[2,1,64], index: 6, kind: input, shape index: {}]
  %s7 = inlined_call_operand.vmem [shape: bf16[2,64,32], index: 7, kind: input, shape index: {}]
  %s8 = inlined_call_operand.vmem [shape: f32[2,1,32], index: 8, kind: input, shape index: {}]
  %s9 = inlined_call_operand.vmem [shape: f32[2,1,32], index: 9, kind: input, shape index: {}]
  %s10 = inlined_call_operand.vmem [shape: f32[2,1,32], index: 10, kind: input, shape index: {}]
  %s11 = inlined_call_operand.vmem [shape: f32[2,1,32], index: 11, kind: input, shape index: {}]
  %s12 = inlined_call_operand.vmem [shape: f32[2,1,32], index: 12, kind: input, shape index: {}]
  %s13 = inlined_call_operand.vmem [shape: f32[16,32], index: 13, kind: output, shape index: {}]
  %s14 = sld [smem:[#allocation0]]
  $region104: #{transformer_forward.2} parent=0
    _
  %s16 = ssub.s32 1, %s14
  %s17 = scalar_select 0, %s16, %s14
  loop: start=0, step=1, limit=4
  $region2: #{transformer_forward.2} parent=0 // loop_pre_header
    _
  $region3: #{transformer_forward.2} parent=0 // loop_header
    %s19 = sphi 0, %s23
    %p20 = scmp.ge.s32.totalorder %s19, 4
    %s26 = sphi 0, %s38
    %s27 = sphi 0, %s34
    %s28 = sphi 0, %s26
    %s29 = sphi 0, %s27
    %s30 = sphi 0, %s28
    %s31 = sphi 0, %s29
    %s41 = sphi 0, %s43
    %s44 = sphi 0, %s41
    %s45 = sphi 0, %s44
    %s61 = sphi 0, %s45
    %s67 = sphi 0, %s69
    %s70 = sphi 0, %s67
    %s71 = sphi 0, %s70
    %s87 = sphi 0, %s71
    %s93 = sphi 0, %s95
    %s96 = sphi 0, %s93
    %s97 = sphi 0, %s96
    %s113 = sphi 0, %s97
    %s119 = sphi 0, %s121
    %s122 = sphi 0, %s119
    %s123 = sphi 0, %s122
    %s139 = sphi 0, %s123
    %s145 = sphi 0, %s147
    %s148 = sphi 0, %s145
    %s149 = sphi 0, %s148
    %s165 = sphi 0, %s149
    %s171 = sphi 0, %s173
    %s174 = sphi 0, %s171
    %s175 = sphi 0, %s174
    %s191 = sphi 0, %s175
    %s197 = sphi 0, %s199
    %s200 = sphi 0, %s197
    %s201 = sphi 0, %s200
    %s217 = sphi 0, %s201
    %s223 = sphi 0, %s225
    %s226 = sphi 0, %s223
    %s227 = sphi 0, %s226
    %s243 = sphi 0, %s227
    %s249 = sphi 0, %s251
    %s252 = sphi 0, %s249
    %s253 = sphi 0, %s252
    %s269 = sphi 0, %s253
    %s275 = sphi 0, %s277
    %s278 = sphi 0, %s275
    %s279 = sphi 0, %s278
    %s295 = sphi 0, %s279
    %s301 = sphi 0, %s303
    %s304 = sphi 0, %s301
    %s305 = sphi 0, %s304
    %s321 = sphi 0, %s305
    %s327 = sphi 0, %s329
    %s330 = sphi 0, %s327
    %s331 = sphi 0, %s330
    %s347 = sphi 0, %s331
    %s353 = sphi 0, %s355
    %s356 = sphi 0, %s353
    %s357 = sphi 0, %s356
    %s373 = sphi 0, %s357
  $region4: #{transformer_forward.2} parent=0 // loop_header_branch
    %22 = sbr.rel (%p20) target = $region8
  $region5: #{transformer_forward.2} parent=0 // loop_body
    %s24 = ssub.s32 %s19, 1
    %s25 = ssub.s32 %s19, 2
    %s32 = sadd.s32 1, %s27
    %p33 = scmp.ge.s32.totalorder %s32, 2
    %s34 = scalar_select %p33, 0, %s32
    %s35 = sadd.s32 1, %s26
    %s36 = scalar_select %p33, %s35, %s26
    %p37 = scmp.ge.s32.totalorder %s36, 1
    %s38 = scalar_select %p37, 0, %s36
    %s39 = ssub.s32 %s27, %s34
    %p40 = scmp.eq.s32.totalorder %s39, 0
    %s42 = sadd.s32 %s41, 1
    %s43 = scalar_select %p40, %s41, %s42
    %p46 = pneg %p40
    %p47 = scmp.eq.s32.totalorder %s19, 1
    %p48 = por %p46, %p47
    %p49 = scmp.ne.s32.totalorder %s41, %s44
    %p50 = scmp.eq.s32.totalorder %s19, 0
    %p51 = por %p49, %p50
    %p52 = scmp.ne.s32.totalorder %s41, %s44
    %p53 = scmp.eq.s32.totalorder %s24, 1
    %p54 = por %p52, %p53
    %p55 = scmp.ne.s32.totalorder %s44, %s45
    %p56 = scmp.eq.s32.totalorder %s24, 0
    %p57 = por %p55, %p56
    %p58 = scmp.ne.s32.totalorder %s44, %s45
    %p59 = scmp.eq.s32.totalorder %s25, 1
    %p60 = por %p58, %p59
    %p62 = scmp.ne.s32.totalorder %s45, %s61
    %p63 = scmp.eq.s32.totalorder %s25, 0
    %p64 = por %p62, %p63
    %s65 = ssub.s32 %s27, %s34
    %p66 = scmp.eq.s32.totalorder %s65, 0
    %s68 = sadd.s32 %s67, 1
    %s69 = scalar_select %p66, %s67, %s68
    %p72 = pneg %p66
    %p73 = scmp.eq.s32.totalorder %s19, 1
    %p74 = por %p72, %p73
    %p75 = scmp.ne.s32.totalorder %s67, %s70
    %p76 = scmp.eq.s32.totalorder %s19, 0
    %p77 = por %p75, %p76
    %p78 = scmp.ne.s32.totalorder %s67, %s70
    %p79 = scmp.eq.s32.totalorder %s24, 1
    %p80 = por %p78, %p79
    %p81 = scmp.ne.s32.totalorder %s70, %s71
    %p82 = scmp.eq.s32.totalorder %s24, 0
    %p83 = por %p81, %p82
    %p84 = scmp.ne.s32.totalorder %s70, %s71
    %p85 = scmp.eq.s32.totalorder %s25, 1
    %p86 = por %p84, %p85
    %p88 = scmp.ne.s32.totalorder %s71, %s87
    %p89 = scmp.eq.s32.totalorder %s25, 0
    %p90 = por %p88, %p89
    %s91 = ssub.s32 %s27, %s34
    %p92 = scmp.eq.s32.totalorder %s91, 0
    %s94 = sadd.s32 %s93, 1
    %s95 = scalar_select %p92, %s93, %s94
    %p98 = pneg %p92
    %p99 = scmp.eq.s32.totalorder %s19, 1
    %p100 = por %p98, %p99
    %p101 = scmp.ne.s32.totalorder %s93, %s96
    %p102 = scmp.eq.s32.totalorder %s19, 0
    %p103 = por %p101, %p102
    %p104 = scmp.ne.s32.totalorder %s93, %s96
    %p105 = scmp.eq.s32.totalorder %s24, 1
    %p106 = por %p104, %p105
    %p107 = scmp.ne.s32.totalorder %s96, %s97
    %p108 = scmp.eq.s32.totalorder %s24, 0
    %p109 = por %p107, %p108
    %p110 = scmp.ne.s32.totalorder %s96, %s97
    %p111 = scmp.eq.s32.totalorder %s25, 1
    %p112 = por %p110, %p111
    %p114 = scmp.ne.s32.totalorder %s97, %s113
    %p115 = scmp.eq.s32.totalorder %s25, 0
    %p116 = por %p114, %p115
    %s117 = ssub.s32 %s27, %s34
    %p118 = scmp.eq.s32.totalorder %s117, 0
    %s120 = sadd.s32 %s119, 1
    %s121 = scalar_select %p118, %s119, %s120
    %p124 = pneg %p118
    %p125 = scmp.eq.s32.totalorder %s19, 1
    %p126 = por %p124, %p125
    %p127 = scmp.ne.s32.totalorder %s119, %s122
    %p128 = scmp.eq.s32.totalorder %s19, 0
    %p129 = por %p127, %p128
    %p130 = scmp.ne.s32.totalorder %s119, %s122
    %p131 = scmp.eq.s32.totalorder %s24, 1
    %p132 = por %p130, %p131
    %p133 = scmp.ne.s32.totalorder %s122, %s123
    %p134 = scmp.eq.s32.totalorder %s24, 0
    %p135 = por %p133, %p134
    %p136 = scmp.ne.s32.totalorder %s122, %s123
    %p137 = scmp.eq.s32.totalorder %s25, 1
    %p138 = por %p136, %p137
    %p140 = scmp.ne.s32.totalorder %s123, %s139
    %p141 = scmp.eq.s32.totalorder %s25, 0
    %p142 = por %p140, %p141
    %s143 = ssub.s32 %s27, %s34
    %p144 = scmp.eq.s32.totalorder %s143, 0
    %s146 = sadd.s32 %s145, 1
    %s147 = scalar_select %p144, %s145, %s146
    %p150 = pneg %p144
    %p151 = scmp.eq.s32.totalorder %s19, 1
    %p152 = por %p150, %p151
    %p153 = scmp.ne.s32.totalorder %s145, %s148
    %p154 = scmp.eq.s32.totalorder %s19, 0
    %p155 = por %p153, %p154
    %p156 = scmp.ne.s32.totalorder %s145, %s148
    %p157 = scmp.eq.s32.totalorder %s24, 1
    %p158 = por %p156, %p157
    %p159 = scmp.ne.s32.totalorder %s148, %s149
    %p160 = scmp.eq.s32.totalorder %s24, 0
    %p161 = por %p159, %p160
    %p162 = scmp.ne.s32.totalorder %s148, %s149
    %p163 = scmp.eq.s32.totalorder %s25, 1
    %p164 = por %p162, %p163
    %p166 = scmp.ne.s32.totalorder %s149, %s165
    %p167 = scmp.eq.s32.totalorder %s25, 0
    %p168 = por %p166, %p167
    %s169 = ssub.s32 %s27, %s34
    %p170 = scmp.eq.s32.totalorder %s169, 0
    %s172 = sadd.s32 %s171, 1
    %s173 = scalar_select %p170, %s171, %s172
    %p176 = pneg %p170
    %p177 = scmp.eq.s32.totalorder %s19, 1
    %p178 = por %p176, %p177
    %p179 = scmp.ne.s32.totalorder %s171, %s174
    %p180 = scmp.eq.s32.totalorder %s19, 0
    %p181 = por %p179, %p180
    %p182 = scmp.ne.s32.totalorder %s171, %s174
    %p183 = scmp.eq.s32.totalorder %s24, 1
    %p184 = por %p182, %p183
    %p185 = scmp.ne.s32.totalorder %s174, %s175
    %p186 = scmp.eq.s32.totalorder %s24, 0
    %p187 = por %p185, %p186
    %p188 = scmp.ne.s32.totalorder %s174, %s175
    %p189 = scmp.eq.s32.totalorder %s25, 1
    %p190 = por %p188, %p189
    %p192 = scmp.ne.s32.totalorder %s175, %s191
    %p193 = scmp.eq.s32.totalorder %s25, 0
    %p194 = por %p192, %p193
    %s195 = ssub.s32 %s27, %s34
    %p196 = scmp.eq.s32.totalorder %s195, 0
    %s198 = sadd.s32 %s197, 1
    %s199 = scalar_select %p196, %s197, %s198
    %p202 = pneg %p196
    %p203 = scmp.eq.s32.totalorder %s19, 1
    %p204 = por %p202, %p203
    %p205 = scmp.ne.s32.totalorder %s197, %s200
    %p206 = scmp.eq.s32.totalorder %s19, 0
    %p207 = por %p205, %p206
    %p208 = scmp.ne.s32.totalorder %s197, %s200
    %p209 = scmp.eq.s32.totalorder %s24, 1
    %p210 = por %p208, %p209
    %p211 = scmp.ne.s32.totalorder %s200, %s201
    %p212 = scmp.eq.s32.totalorder %s24, 0
    %p213 = por %p211, %p212
    %p214 = scmp.ne.s32.totalorder %s200, %s201
    %p215 = scmp.eq.s32.totalorder %s25, 1
    %p216 = por %p214, %p215
    %p218 = scmp.ne.s32.totalorder %s201, %s217
    %p219 = scmp.eq.s32.totalorder %s25, 0
    %p220 = por %p218, %p219
    %s221 = ssub.s32 %s27, %s34
    %p222 = scmp.eq.s32.totalorder %s221, 0
    %s224 = sadd.s32 %s223, 1
    %s225 = scalar_select %p222, %s223, %s224
    %p228 = pneg %p222
    %p229 = scmp.eq.s32.totalorder %s19, 1
    %p230 = por %p228, %p229
    %p231 = scmp.ne.s32.totalorder %s223, %s226
    %p232 = scmp.eq.s32.totalorder %s19, 0
    %p233 = por %p231, %p232
    %p234 = scmp.ne.s32.totalorder %s223, %s226
    %p235 = scmp.eq.s32.totalorder %s24, 1
    %p236 = por %p234, %p235
    %p237 = scmp.ne.s32.totalorder %s226, %s227
    %p238 = scmp.eq.s32.totalorder %s24, 0
    %p239 = por %p237, %p238
    %p240 = scmp.ne.s32.totalorder %s226, %s227
    %p241 = scmp.eq.s32.totalorder %s25, 1
    %p242 = por %p240, %p241
    %p244 = scmp.ne.s32.totalorder %s227, %s243
    %p245 = scmp.eq.s32.totalorder %s25, 0
    %p246 = por %p244, %p245
    %s247 = ssub.s32 %s27, %s34
    %p248 = scmp.eq.s32.totalorder %s247, 0
    %s250 = sadd.s32 %s249, 1
    %s251 = scalar_select %p248, %s249, %s250
    %p254 = pneg %p248
    %p255 = scmp.eq.s32.totalorder %s19, 1
    %p256 = por %p254, %p255
    %p257 = scmp.ne.s32.totalorder %s249, %s252
    %p258 = scmp.eq.s32.totalorder %s19, 0
    %p259 = por %p257, %p258
    %p260 = scmp.ne.s32.totalorder %s249, %s252
    %p261 = scmp.eq.s32.totalorder %s24, 1
    %p262 = por %p260, %p261
    %p263 = scmp.ne.s32.totalorder %s252, %s253
    %p264 = scmp.eq.s32.totalorder %s24, 0
    %p265 = por %p263, %p264
    %p266 = scmp.ne.s32.totalorder %s252, %s253
    %p267 = scmp.eq.s32.totalorder %s25, 1
    %p268 = por %p266, %p267
    %p270 = scmp.ne.s32.totalorder %s253, %s269
    %p271 = scmp.eq.s32.totalorder %s25, 0
    %p272 = por %p270, %p271
    %s273 = ssub.s32 %s27, %s34
    %p274 = scmp.eq.s32.totalorder %s273, 0
    %s276 = sadd.s32 %s275, 1
    %s277 = scalar_select %p274, %s275, %s276
    %p280 = pneg %p274
    %p281 = scmp.eq.s32.totalorder %s19, 1
    %p282 = por %p280, %p281
    %p283 = scmp.ne.s32.totalorder %s275, %s278
    %p284 = scmp.eq.s32.totalorder %s19, 0
    %p285 = por %p283, %p284
    %p286 = scmp.ne.s32.totalorder %s275, %s278
    %p287 = scmp.eq.s32.totalorder %s24, 1
    %p288 = por %p286, %p287
    %p289 = scmp.ne.s32.totalorder %s278, %s279
    %p290 = scmp.eq.s32.totalorder %s24, 0
    %p291 = por %p289, %p290
    %p292 = scmp.ne.s32.totalorder %s278, %s279
    %p293 = scmp.eq.s32.totalorder %s25, 1
    %p294 = por %p292, %p293
    %p296 = scmp.ne.s32.totalorder %s279, %s295
    %p297 = scmp.eq.s32.totalorder %s25, 0
    %p298 = por %p296, %p297
    %s299 = ssub.s32 %s27, %s34
    %p300 = scmp.eq.s32.totalorder %s299, 0
    %s302 = sadd.s32 %s301, 1
    %s303 = scalar_select %p300, %s301, %s302
    %p306 = pneg %p300
    %p307 = scmp.eq.s32.totalorder %s19, 1
    %p308 = por %p306, %p307
    %p309 = scmp.ne.s32.totalorder %s301, %s304
    %p310 = scmp.eq.s32.totalorder %s19, 0
    %p311 = por %p309, %p310
    %p312 = scmp.ne.s32.totalorder %s301, %s304
    %p313 = scmp.eq.s32.totalorder %s24, 1
    %p314 = por %p312, %p313
    %p315 = scmp.ne.s32.totalorder %s304, %s305
    %p316 = scmp.eq.s32.totalorder %s24, 0
    %p317 = por %p315, %p316
    %p318 = scmp.ne.s32.totalorder %s304, %s305
    %p319 = scmp.eq.s32.totalorder %s25, 1
    %p320 = por %p318, %p319
    %p322 = scmp.ne.s32.totalorder %s305, %s321
    %p323 = scmp.eq.s32.totalorder %s25, 0
    %p324 = por %p322, %p323
    %s325 = ssub.s32 %s27, %s34
    %p326 = scmp.eq.s32.totalorder %s325, 0
    %s328 = sadd.s32 %s327, 1
    %s329 = scalar_select %p326, %s327, %s328
    %p332 = pneg %p326
    %p333 = scmp.eq.s32.totalorder %s19, 1
    %p334 = por %p332, %p333
    %p335 = scmp.ne.s32.totalorder %s327, %s330
    %p336 = scmp.eq.s32.totalorder %s19, 0
    %p337 = por %p335, %p336
    %p338 = scmp.ne.s32.totalorder %s327, %s330
    %p339 = scmp.eq.s32.totalorder %s24, 1
    %p340 = por %p338, %p339
    %p341 = scmp.ne.s32.totalorder %s330, %s331
    %p342 = scmp.eq.s32.totalorder %s24, 0
    %p343 = por %p341, %p342
    %p344 = scmp.ne.s32.totalorder %s330, %s331
    %p345 = scmp.eq.s32.totalorder %s25, 1
    %p346 = por %p344, %p345
    %p348 = scmp.ne.s32.totalorder %s331, %s347
    %p349 = scmp.eq.s32.totalorder %s25, 0
    %p350 = por %p348, %p349
    %s351 = ssub.s32 %s26, %s38
    %p352 = scmp.eq.s32.totalorder %s351, 0
    %s354 = sadd.s32 %s353, 1
    %s355 = scalar_select %p352, %s353, %s354
    %p358 = pneg %p352
    %p359 = scmp.eq.s32.totalorder %s19, 1
    %p360 = por %p358, %p359
    %p361 = scmp.ne.s32.totalorder %s353, %s356
    %p362 = scmp.eq.s32.totalorder %s19, 0
    %p363 = por %p361, %p362
    %p364 = scmp.ne.s32.totalorder %s353, %s356
    %p365 = scmp.eq.s32.totalorder %s24, 1
    %p366 = por %p364, %p365
    %p367 = scmp.ne.s32.totalorder %s356, %s357
    %p368 = scmp.eq.s32.totalorder %s24, 0
    %p369 = por %p367, %p368
    %p370 = scmp.ne.s32.totalorder %s356, %s357
    %p371 = scmp.eq.s32.totalorder %s25, 1
    %p372 = por %p370, %p371
    %p374 = scmp.ne.s32.totalorder %s357, %s373
    %p375 = scmp.eq.s32.totalorder %s25, 0
    %p376 = por %p374, %p375
    %p377 = scmp.le.s32.totalorder 1, %s19
    %p378 = scmp.lt.s32.totalorder %s19, 3
    %p379 = pnand %p377, %p378
    %p380 = pneg %p379
    // Predicated region
    $region9: #{transformer_forward.2} parent=5 // pred_check
      _
    $region10: #{transformer_forward.2} parent=5 // pred_check_branch
      %382 = sbr.rel (%p379) target = $region12
    $region11: #{transformer_forward.2} parent=5 // pred_region
      %s383 = ssub.s32 %s19, 1
    $region12: #{transformer_forward.2} parent=5 // pred_fallthru
      _
    %p384 = scmp.lt.s32.totalorder %s19, 2
    // Predicated region
    $region13: #{transformer_forward.2} parent=5 // pred_check
      %p385 = pneg %p384
    $region14: #{transformer_forward.2} parent=5 // pred_check_branch
      %387 = sbr.rel (%p385) target = $region16
    $region15: #{transformer_forward.2} parent=5 // pred_region
      // Predicated region
      $region17: #{transformer_forward.2} parent=15 // pred_check
        %p388 = pneg %p51
      $region18: #{transformer_forward.2} parent=15 // pred_check_branch
        %390 = sbr.rel (%p388) target = $region20
      $region19: #{transformer_forward.2} parent=15 // pred_region
        %p391 = scmp.lt.s32.totalorder %s27, 1
        %s392 = scalar_select %p391, %s27, 1
        %s393 = smul.addr %s392, 4
        %s394 = smul.addr %s393, 4
        %s395 = scalar_lea.vmem %s1, %s394
      $region20: #{transformer_forward.2} parent=15 // pred_fallthru
        _
      // Predicated region
      $region21: #{transformer_forward.2} parent=15 // pred_check
        %p396 = pneg %p77
      $region22: #{transformer_forward.2} parent=15 // pred_check_branch
        %398 = sbr.rel (%p396) target = $region24
      $region23: #{transformer_forward.2} parent=15 // pred_region
        %p399 = scmp.lt.s32.totalorder %s27, 1
        %s400 = scalar_select %p399, %s27, 1
        %s401 = scalar_lea.vmem %s2, %s400
      $region24: #{transformer_forward.2} parent=15 // pred_fallthru
        _
      // Predicated region
      $region25: #{transformer_forward.2} parent=15 // pred_check
        %p402 = pneg %p103
      $region26: #{transformer_forward.2} parent=15 // pred_check_branch
        %404 = sbr.rel (%p402) target = $region28
      $region27: #{transformer_forward.2} parent=15 // pred_region
        %p405 = scmp.lt.s32.totalorder %s27, 1
        %s406 = scalar_select %p405, %s27, 1
        %s407 = smul.addr %s406, 4
        %s408 = smul.addr %s407, 4
        %s409 = scalar_lea.vmem %s3, %s408
      $region28: #{transformer_forward.2} parent=15 // pred_fallthru
        _
      // Predicated region
      $region29: #{transformer_forward.2} parent=15 // pred_check
        %p410 = pneg %p129
      $region30: #{transformer_forward.2} parent=15 // pred_check_branch
        %412 = sbr.rel (%p410) target = $region32
      $region31: #{transformer_forward.2} parent=15 // pred_region
        %p413 = scmp.lt.s32.totalorder %s27, 1
        %s414 = scalar_select %p413, %s27, 1
        %s415 = scalar_lea.vmem %s4, %s414
      $region32: #{transformer_forward.2} parent=15 // pred_fallthru
        _
      // Predicated region
      $region33: #{transformer_forward.2} parent=15 // pred_check
        %p416 = pneg %p155
      $region34: #{transformer_forward.2} parent=15 // pred_check_branch
        %418 = sbr.rel (%p416) target = $region36
      $region35: #{transformer_forward.2} parent=15 // pred_region
        %p419 = scmp.lt.s32.totalorder %s27, 1
        %s420 = scalar_select %p419, %s27, 1
        %s421 = smul.addr %s420, 4
        %s422 = smul.addr %s421, 4
        %s423 = scalar_lea.vmem %s5, %s422
      $region36: #{transformer_forward.2} parent=15 // pred_fallthru
        _
      // Predicated region
      $region37: #{transformer_forward.2} parent=15 // pred_check
        %p424 = pneg %p181
      $region38: #{transformer_forward.2} parent=15 // pred_check_branch
        %426 = sbr.rel (%p424) target = $region40
      $region39: #{transformer_forward.2} parent=15 // pred_region
        %p427 = scmp.lt.s32.totalorder %s27, 1
        %s428 = scalar_select %p427, %s27, 1
        %s429 = scalar_lea.vmem %s6, %s428
      $region40: #{transformer_forward.2} parent=15 // pred_fallthru
        _
      // Predicated region
      $region41: #{transformer_forward.2} parent=15 // pred_check
        %p430 = pneg %p207
      $region42: #{transformer_forward.2} parent=15 // pred_check_branch
        %432 = sbr.rel (%p430) target = $region44
      $region43: #{transformer_forward.2} parent=15 // pred_region
        %p433 = scmp.lt.s32.totalorder %s27, 1
        %s434 = scalar_select %p433, %s27, 1
        %s435 = smul.addr %s434, 8
        %s436 = smul.addr %s435, 4
        %s437 = scalar_lea.vmem %s7, %s436
      $region44: #{transformer_forward.2} parent=15 // pred_fallthru
        _
      // Predicated region
      $region45: #{transformer_forward.2} parent=15 // pred_check
        %p438 = pneg %p233
      $region46: #{transformer_forward.2} parent=15 // pred_check_branch
        %440 = sbr.rel (%p438) target = $region48
      $region47: #{transformer_forward.2} parent=15 // pred_region
        %p441 = scmp.lt.s32.totalorder %s27, 1
        %s442 = scalar_select %p441, %s27, 1
        %s443 = scalar_lea.vmem %s8, %s442
      $region48: #{transformer_forward.2} parent=15 // pred_fallthru
        _
      // Predicated region
      $region49: #{transformer_forward.2} parent=15 // pred_check
        %p444 = pneg %p259
      $region50: #{transformer_forward.2} parent=15 // pred_check_branch
        %446 = sbr.rel (%p444) target = $region52
      $region51: #{transformer_forward.2} parent=15 // pred_region
        %p447 = scmp.lt.s32.totalorder %s27, 1
        %s448 = scalar_select %p447, %s27, 1
        %s449 = scalar_lea.vmem %s9, %s448
      $region52: #{transformer_forward.2} parent=15 // pred_fallthru
        _
      // Predicated region
      $region53: #{transformer_forward.2} parent=15 // pred_check
        %p450 = pneg %p285
      $region54: #{transformer_forward.2} parent=15 // pred_check_branch
        %452 = sbr.rel (%p450) target = $region56
      $region55: #{transformer_forward.2} parent=15 // pred_region
        %p453 = scmp.lt.s32.totalorder %s27, 1
        %s454 = scalar_select %p453, %s27, 1
        %s455 = scalar_lea.vmem %s10, %s454
      $region56: #{transformer_forward.2} parent=15 // pred_fallthru
        _
      // Predicated region
      $region57: #{transformer_forward.2} parent=15 // pred_check
        %p456 = pneg %p311
      $region58: #{transformer_forward.2} parent=15 // pred_check_branch
        %458 = sbr.rel (%p456) target = $region60
      $region59: #{transformer_forward.2} parent=15 // pred_region
        %p459 = scmp.lt.s32.totalorder %s27, 1
        %s460 = scalar_select %p459, %s27, 1
        %s461 = scalar_lea.vmem %s11, %s460
      $region60: #{transformer_forward.2} parent=15 // pred_fallthru
        _
      // Predicated region
      $region61: #{transformer_forward.2} parent=15 // pred_check
        %p462 = pneg %p337
      $region62: #{transformer_forward.2} parent=15 // pred_check_branch
        %464 = sbr.rel (%p462) target = $region64
      $region63: #{transformer_forward.2} parent=15 // pred_region
        %p465 = scmp.lt.s32.totalorder %s27, 1
        %s466 = scalar_select %p465, %s27, 1
        %s467 = scalar_lea.vmem %s12, %s466
      $region64: #{transformer_forward.2} parent=15 // pred_fallthru
        _
    $region16: #{transformer_forward.2} parent=5 // pred_fallthru
      _
    %p468 = scmp.le.s32.totalorder 1, %s19
    %p469 = scmp.lt.s32.totalorder %s19, 3
    %p470 = pnand %p468, %p469
    %p471 = pneg %p470
    // Predicated region
    $region65: #{transformer_forward.2} parent=5 // pred_check
      _
    $region66: #{transformer_forward.2} parent=5 // pred_check_branch
      %473 = sbr.rel (%p470) target = $region68
    $region67: #{transformer_forward.2} parent=5 // pred_region
      %s474 = ssub.s32 %s19, 1
      %p475 = scmp.lt.s32.totalorder %s29, 1
      %s476 = scalar_select %p475, %s29, 1
      %s477 = smul.addr %s476, 4
      %s478 = smul.addr %s477, 4
      %s479 = scalar_lea.vmem %s1, %s478
      %p480 = pneg %p57
      %p481 = pneg %p54
      %p482 = scmp.lt.s32.totalorder %s29, 1
      %s483 = scalar_select %p482, %s29, 1
      %s484 = scalar_lea.vmem %s2, %s483
      %p485 = pneg %p83
      %p486 = pneg %p80
      %p487 = scmp.lt.s32.totalorder %s29, 1
      %s488 = scalar_select %p487, %s29, 1
      %s489 = smul.addr %s488, 4
      %s490 = smul.addr %s489, 4
      %s491 = scalar_lea.vmem %s3, %s490
      %p492 = pneg %p109
      %p493 = pneg %p106
      %p494 = scmp.lt.s32.totalorder %s29, 1
      %s495 = scalar_select %p494, %s29, 1
      %s496 = scalar_lea.vmem %s4, %s495
      %p497 = pneg %p135
      %p498 = pneg %p132
      %p499 = scmp.lt.s32.totalorder %s29, 1
      %s500 = scalar_select %p499, %s29, 1
      %s501 = smul.addr %s500, 4
      %s502 = smul.addr %s501, 4
      %s503 = scalar_lea.vmem %s5, %s502
      %p504 = pneg %p161
      %p505 = pneg %p158
      %p506 = scmp.lt.s32.totalorder %s29, 1
      %s507 = scalar_select %p506, %s29, 1
      %s508 = scalar_lea.vmem %s6, %s507
      %p509 = pneg %p187
      %p510 = pneg %p184
      %p511 = scmp.lt.s32.totalorder %s29, 1
      %s512 = scalar_select %p511, %s29, 1
      %s513 = smul.addr %s512, 8
      %s514 = smul.addr %s513, 4
      %s515 = scalar_lea.vmem %s7, %s514
      %p516 = pneg %p213
      %p517 = pneg %p210
      %p518 = scmp.lt.s32.totalorder %s29, 1
      %s519 = scalar_select %p518, %s29, 1
      %s520 = scalar_lea.vmem %s8, %s519
      %p521 = pneg %p239
      %p522 = pneg %p236
      %p523 = scmp.lt.s32.totalorder %s29, 1
      %s524 = scalar_select %p523, %s29, 1
      %s525 = scalar_lea.vmem %s9, %s524
      %p526 = pneg %p265
      %p527 = pneg %p262
      %p528 = scmp.lt.s32.totalorder %s29, 1
      %s529 = scalar_select %p528, %s29, 1
      %s530 = scalar_lea.vmem %s10, %s529
      %p531 = pneg %p291
      %p532 = pneg %p288
      %p533 = scmp.lt.s32.totalorder %s29, 1
      %s534 = scalar_select %p533, %s29, 1
      %s535 = scalar_lea.vmem %s11, %s534
      %p536 = pneg %p317
      %p537 = pneg %p314
      %p538 = scmp.lt.s32.totalorder %s29, 1
      %s539 = scalar_select %p538, %s29, 1
      %s540 = scalar_lea.vmem %s12, %s539
      %p541 = pneg %p343
      %p542 = pneg %p340
      %p543 = pneg %p369
      %p544 = pneg %p366
      %s545 = smul.u32 2, %s28
      %p546 = scmp.lt.s32.totalorder %s545, 1
      %s547 = scalar_select %p546, %s545, 1
      %s548 = smul.addr %s547, 8
      %s549 = scalar_lea.vmem %s13, %s548
      %p550 = scmp.lt.s32.totalorder %s29, 1
      %s551 = scalar_select %p550, %s29, 1
      %s552 = smul.addr %s551, 4
      %s553 = smul.addr %s552, 4
      %s554 = scalar_lea.vmem %s1, %s553
      %p555 = scmp.lt.s32.totalorder %s29, 1
      %s556 = scalar_select %p555, %s29, 1
      %s557 = scalar_lea.vmem %s2, %s556
      %p558 = scmp.lt.s32.totalorder %s29, 1
      %s559 = scalar_select %p558, %s29, 1
      %s560 = smul.addr %s559, 4
      %s561 = smul.addr %s560, 4
      %s562 = scalar_lea.vmem %s3, %s561
      %p563 = scmp.lt.s32.totalorder %s29, 1
      %s564 = scalar_select %p563, %s29, 1
      %s565 = scalar_lea.vmem %s4, %s564
      %p566 = scmp.lt.s32.totalorder %s29, 1
      %s567 = scalar_select %p566, %s29, 1
      %s568 = smul.addr %s567, 4
      %s569 = smul.addr %s568, 4
      %s570 = scalar_lea.vmem %s5, %s569
      %p571 = scmp.lt.s32.totalorder %s29, 1
      %s572 = scalar_select %p571, %s29, 1
      %s573 = scalar_lea.vmem %s6, %s572
      %p574 = scmp.lt.s32.totalorder %s29, 1
      %s575 = scalar_select %p574, %s29, 1
      %s576 = smul.addr %s575, 8
      %s577 = smul.addr %s576, 4
      %s578 = scalar_lea.vmem %s7, %s577
      %p579 = scmp.lt.s32.totalorder %s29, 1
      %s580 = scalar_select %p579, %s29, 1
      %s581 = scalar_lea.vmem %s8, %s580
      %p582 = scmp.lt.s32.totalorder %s29, 1
      %s583 = scalar_select %p582, %s29, 1
      %s584 = scalar_lea.vmem %s9, %s583
      %p585 = scmp.lt.s32.totalorder %s29, 1
      %s586 = scalar_select %p585, %s29, 1
      %s587 = scalar_lea.vmem %s10, %s586
      %p588 = scmp.lt.s32.totalorder %s29, 1
      %s589 = scalar_select %p588, %s29, 1
      %s590 = scalar_lea.vmem %s11, %s589
      %p591 = scmp.lt.s32.totalorder %s29, 1
      %s592 = scalar_select %p591, %s29, 1
      %s593 = scalar_lea.vmem %s12, %s592
      %s594 = smul.u32 2, %s28
      %p595 = scmp.lt.s32.totalorder %s594, 1
      %s596 = scalar_select %p595, %s594, 1
      %s597 = smul.addr %s596, 8
      %s598 = scalar_lea.vmem %s13, %s597
      %s599 = smul.u32 2, %s28
      %p601 = scmp.eq.s32.totalorder %s29, 0
      // Predicated region
      $region69: #{transformer_forward.2} parent=67 // pred_check
        %p602 = pneg %p601
      $region70: #{transformer_forward.2} parent=67 // pred_check_branch
        %604 = sbr.rel (%p602) target = $region72
      $region71: #{transformer_forward.2} parent=67 // pred_region
        %s605 = smul.u32 %s28, 16
        %s606 = scalar_lea.vmem %s0, %s605
        // Predicated region
        $region73: #{transformer_forward.2} parent=71 // pred_check
          _
        $region74: #{transformer_forward.2} parent=71 // pred_check_branch
          %608 = sbr.rel (0) target = $region76
        $region75: #{transformer_forward.2} parent=71 // pred_region
          loop: start=0, step=1, limit=1
          $region77: #{transformer_forward.2} parent=75 // loop_pre_header
            _
          $region78: #{transformer_forward.2} parent=75 // loop_header
            %s610 = sphi 0, %s614
            %p611 = scmp.ge.s32.totalorder %s610, 1
            %s615 = sphi %s606, %s606
            %s616 = sphi %s598, %s598
          $region79: #{transformer_forward.2} parent=75 // loop_header_branch
            %613 = sbr.rel (%p611) target = $region83
          $region80: #{transformer_forward.2} parent=75 // loop_body
            %v617 = vld [vmem:[%s615] sm:$0xff]
            %618 = vst [vmem:[%s616] sm:$0xff] %v617
            %v619 = vld [vmem:[%s615 + $0x8] sm:$0xff]
            %620 = vst [vmem:[%s616 + $0x8] sm:$0xff] %v619
          $region81: #{transformer_forward.2} parent=75 // loop_footer
            %s614 = sadd.s32 1, %s610
          $region82: #{transformer_forward.2} parent=75 // loop_footer_branch
            %609 = sbr.rel target = $region78
          $region83: #{transformer_forward.2} parent=75 // loop_exit
            _
        $region76: #{transformer_forward.2} parent=71 // pred_fallthru
          _
        // Predicated region
        $region84: #{transformer_forward.2} parent=71 // pred_check
          _
        $region85: #{transformer_forward.2} parent=71 // pred_check_branch
          %622 = sbr.rel target = $region87
        $region86: #{transformer_forward.2} parent=71 // pred_region
          _
        $region87: #{transformer_forward.2} parent=71 // pred_fallthru
          _
        // Predicated region
        $region88: #{transformer_forward.2} parent=71 // pred_check
          _
        $region89: #{transformer_forward.2} parent=71 // pred_check_branch
          %625 = sbr.rel (0) target = $region91
        $region90: #{transformer_forward.2} parent=71 // pred_region
          %626 = vsyncadd [#allocation2], 256
        $region91: #{transformer_forward.2} parent=71 // pred_fallthru
          _
        %s627 = smul.u32 16, 1
        %s628 = sshll.u32 %s627, 4
        %629 = dma.done [#allocation2], %s628
      $region72: #{transformer_forward.2} parent=67 // pred_fallthru
        _
      %v630 = vld [vmem:[%s598] sm:$0xff]
      %v631 = vld [vmem:[%s598 + $0x8] sm:$0xff]
      %v632 = vpack.c.bf16 %v631, %v630
      %v633 = vld [vmem:[%s554] sm:$0xf]
      %v634 = vld [vmem:[%s554 + $0x4] sm:$0xf]
      %v635 = vld [vmem:[%s554 + $0x8] sm:$0xf]
      %v636 = vld [vmem:[%s554 + $0xc] sm:$0xf]
      %v637 = vld [vmem:[%s557] sm:$0x1]
      %v639 = vperm.slane %v637, 0
      %v645 = vunpack.c.l.b16 %v633
      %v646 = vunpack.c.l.b16 %v634
      %v647 = vunpack.c.l.b16 %v635
      %v648 = vunpack.c.l.b16 %v636
      %v649 = vpack.c.b16 %v646, %v645
      %v650 = vpack.c.b16 %v648, %v647
      %vm653 = vcmask 261120
      %v655 = vsel %vm653, %v632, 0
      %657 = vmatpush.bf16.msra.mxu0 0
      %658 = vmatpush.bf16.msra.mxu0 0
      %659 = vmatpush.bf16.msra.mxu0 0
      %660 = vmatpush.bf16.msra.mxu0 0
      %661 = vmatpush.bf16.msra.mxu0 0
      %662 = vmatpush.bf16.msra.mxu0 0
      %663 = vmatpush.bf16.msra.mxu0 %v650
      %664 = vmatpush.bf16.msra.mxu0 %v649
      %665 = vmatmul.bf16.gmra.mxu0 %v655
      %v666 = vpop.f32.mrf.mxu0
      %v667 = vadd.f32 %v639, %v666
      %v668 = vpop.f32.mrf.mxu0
      %v669 = vadd.f32 %v639, %v668
      %670 = vdwg.mxu0
      %v671 = vpack.c.bf16 %v667, %v667
      %v672 = vpack.c.bf16 %v669, %v669
      %v673 = vlaneseq
      %v674 = vshrl.u32 %v673, 7
      %v675 = vlaneseq
      %v676 = vand.u32 %v675, 127
      %vm677 = vcmp.le.s32.totalorder %v676, %v674
      %v678 = vsel %vm677, 0.0, -1e+30
      %v680 = vunpack.c.l.b16 %v671
      %v681 = vpack.c.b16 %v680, %v680
      %682 = vrot.lane.b32.xlu0 %v681, 96
      %v683 = vpop.permute.xlu0 %682
      %vm684 = vcmask 130048
      %v686 = vsel %vm684, %v671, 0
      %v689 = vsel %vm684, %v683, 0
      %691 = vmatpush.bf16.xpose.msra.mxu0 0
      %692 = vmatpush.bf16.xpose.msra.mxu0 0
      %693 = vmatpush.bf16.xpose.msra.mxu0 0
      %694 = vmatpush.bf16.xpose.msra.mxu0 0
      %695 = vmatpush.bf16.xpose.msra.mxu0 0
      %696 = vmatpush.bf16.xpose.msra.mxu0 0
      %697 = vmatpush.bf16.xpose.msra.mxu0 0
      %698 = vmatpush.bf16.xpose.msra.mxu0 %v689
      %699 = vmatmul.bf16.gmra.mxu0 %v686
      %v700 = vpop.f32.mrf.mxu0
      %v701 = vadd.f32 0.0, %v700
      %v702 = vpop.f32.mrf.mxu0
      %703 = vdwg.mxu0
      %v705 = vunpack.c.l.b16 %v672
      %v706 = vpack.c.b16 %v705, %v705
      %707 = vrot.lane.b32.xlu0 %v706, 96
      %v708 = vpop.permute.xlu0 %707
      %v710 = vsel %vm684, %v672, 0
      %v713 = vsel %vm684, %v708, 0
      %715 = vmatpush.bf16.xpose.msra.mxu0 0
      %716 = vmatpush.bf16.xpose.msra.mxu0 0
      %717 = vmatpush.bf16.xpose.msra.mxu0 0
      %718 = vmatpush.bf16.xpose.msra.mxu0 0
      %719 = vmatpush.bf16.xpose.msra.mxu0 0
      %720 = vmatpush.bf16.xpose.msra.mxu0 0
      %721 = vmatpush.bf16.xpose.msra.mxu0 0
      %722 = vmatpush.bf16.xpose.msra.mxu0 %v713
      %723 = vmatmul.bf16.gmra.mxu0 %v710
      %v724 = vpop.f32.mrf.mxu0
      %v725 = vadd.f32 0.0, %v724
      %v726 = vpop.f32.mrf.mxu0
      %727 = vdwg.mxu0
      %v728 = vmul.f32 %v701, 0.25
      %v729 = vmul.f32 %v725, 0.25
      %v730 = vadd.f32 %v728, %v678
      %v731 = vadd.f32 %v729, %v678
      %vm732 = vcmask 64512
      %v733 = vsel %vm732, %v730, -inf
      %734 = vmax.xlane.f32.xlu0 %v733
      %v735 = vpop.xlane.xlu0 %734
      %v736 = vsel %vm732, %v731, -inf
      %737 = vmax.xlane.f32.xlu0 %v736
      %v738 = vpop.xlane.xlu0 %737
      %v739 = vsub.f32 %v730, %v735
      %v740 = vsub.f32 %v731, %v738
      %v741 = vmul.f32 %v739, 1.442695
      %v742 = vpow.pop %v741
      %v743 = vmul.f32 %v740, 1.442695
      %v744 = vpow.pop %v743
      %v745 = vsel %vm732, %v742, 0.0
      %746 = vadd.xlane.f32.xlu0 %v745
      %v747 = vpop.xlane.xlu0 %746
      %v748 = vsel %vm732, %v744, 0.0
      %749 = vadd.xlane.f32.xlu0 %v748
      %v750 = vpop.xlane.xlu0 %749
      %v751 = vrcp.pop %v747
      %v752 = vrcp.pop %v750
      %v753 = vmul.f32 %v742, %v751
      %v754 = vmul.f32 %v744, %v752
      %v755 = vpack.c.bf16 %v753, %v753
      %v756 = vpack.c.bf16 %v754, %v754
      %757 = vrot.lane.b32.xlu0 %v681, 64
      %v758 = vpop.permute.xlu0 %757
      %v760 = vsel %vm732, %v755, 0
      %vm762 = vcmask 1043456
      %v764 = vsel %vm762, %v758, 0
      %766 = vmatpush.bf16.msra.mxu0 0
      %767 = vmatpush.bf16.msra.mxu0 0
      %768 = vmatpush.bf16.msra.mxu0 0
      %769 = vmatpush.bf16.msra.mxu0 0
      %770 = vmatpush.bf16.msra.mxu0 0
      %771 = vmatpush.bf16.msra.mxu0 0
      %772 = vmatpush.bf16.msra.mxu0 0
      %773 = vmatpush.bf16.msra.mxu0 %v764
      %774 = vmatmul.bf16.gmra.mxu0 %v760
      %v775 = vpop.f32.mrf.mxu0
      %v776 = vadd.f32 0.0, %v775
      %v777 = vpop.f32.mrf.mxu0
      %778 = vdwg.mxu0
      %779 = vrot.lane.b32.xlu0 %v706, 64
      %v780 = vpop.permute.xlu0 %779
      %v782 = vsel %vm732, %v756, 0
      %v785 = vsel %vm762, %v780, 0
      %787 = vmatpush.bf16.msra.mxu0 0
      %788 = vmatpush.bf16.msra.mxu0 0
      %789 = vmatpush.bf16.msra.mxu0 0
      %790 = vmatpush.bf16.msra.mxu0 0
      %791 = vmatpush.bf16.msra.mxu0 0
      %792 = vmatpush.bf16.msra.mxu0 0
      %793 = vmatpush.bf16.msra.mxu0 0
      %794 = vmatpush.bf16.msra.mxu0 %v785
      %795 = vmatmul.bf16.gmra.mxu0 %v782
      %v796 = vpop.f32.mrf.mxu0
      %v797 = vadd.f32 0.0, %v796
      %v798 = vpop.f32.mrf.mxu0
      %799 = vdwg.mxu0
      %800 = vrot.lane.b32.xlu0 %v681, 112
      %v801 = vpop.permute.xlu0 %800
      %802 = vrot.lane.b32.xlu0 %v681, 80
      %v803 = vpop.permute.xlu0 %802
      %v805 = vsel %vm684, %v801, 0
      %v808 = vsel %vm684, %v803, 0
      %810 = vmatpush.bf16.xpose.msra.mxu0 0
      %811 = vmatpush.bf16.xpose.msra.mxu0 0
      %812 = vmatpush.bf16.xpose.msra.mxu0 0
      %813 = vmatpush.bf16.xpose.msra.mxu0 0
      %814 = vmatpush.bf16.xpose.msra.mxu0 0
      %815 = vmatpush.bf16.xpose.msra.mxu0 0
      %816 = vmatpush.bf16.xpose.msra.mxu0 0
      %817 = vmatpush.bf16.xpose.msra.mxu0 %v808
      %818 = vmatmul.bf16.gmra.mxu0 %v805
      %v819 = vpop.f32.mrf.mxu0
      %v820 = vadd.f32 0.0, %v819
      %v821 = vpop.f32.mrf.mxu0
      %822 = vdwg.mxu0
      %823 = vrot.lane.b32.xlu0 %v706, 112
      %v824 = vpop.permute.xlu0 %823
      %825 = vrot.lane.b32.xlu0 %v706, 80
      %v826 = vpop.permute.xlu0 %825
      %v828 = vsel %vm684, %v824, 0
      %v831 = vsel %vm684, %v826, 0
      %833 = vmatpush.bf16.xpose.msra.mxu0 0
      %834 = vmatpush.bf16.xpose.msra.mxu0 0
      %835 = vmatpush.bf16.xpose.msra.mxu0 0
      %836 = vmatpush.bf16.xpose.msra.mxu0 0
      %837 = vmatpush.bf16.xpose.msra.mxu0 0
      %838 = vmatpush.bf16.xpose.msra.mxu0 0
      %839 = vmatpush.bf16.xpose.msra.mxu0 0
      %840 = vmatpush.bf16.xpose.msra.mxu0 %v831
      %841 = vmatmul.bf16.gmra.mxu0 %v828
      %v842 = vpop.f32.mrf.mxu0
      %v843 = vadd.f32 0.0, %v842
      %v844 = vpop.f32.mrf.mxu0
      %845 = vdwg.mxu0
      %v846 = vmul.f32 %v820, 0.25
      %v847 = vmul.f32 %v843, 0.25
      %v848 = vadd.f32 %v846, %v678
      %v849 = vadd.f32 %v847, %v678
      %v850 = vsel %vm732, %v848, -inf
      %851 = vmax.xlane.f32.xlu0 %v850
      %v852 = vpop.xlane.xlu0 %851
      %v853 = vsel %vm732, %v849, -inf
      %854 = vmax.xlane.f32.xlu0 %v853
      %v855 = vpop.xlane.xlu0 %854
      %v856 = vsub.f32 %v848, %v852
      %v857 = vsub.f32 %v849, %v855
      %v858 = vmul.f32 %v856, 1.442695
      %v859 = vpow.pop %v858
      %v860 = vmul.f32 %v857, 1.442695
      %v861 = vpow.pop %v860
      %v862 = vsel %vm732, %v859, 0.0
      %863 = vadd.xlane.f32.xlu0 %v862
      %v864 = vpop.xlane.xlu0 %863
      %v865 = vsel %vm732, %v861, 0.0
      %866 = vadd.xlane.f32.xlu0 %v865
      %v867 = vpop.xlane.xlu0 %866
      %v868 = vrcp.pop %v864
      %v869 = vrcp.pop %v867
      %v870 = vmul.f32 %v859, %v868
      %v871 = vmul.f32 %v861, %v869
      %v872 = vpack.c.bf16 %v870, %v870
      %v873 = vpack.c.bf16 %v871, %v871
      %874 = vrot.lane.b32.xlu0 %v681, 48
      %v875 = vpop.permute.xlu0 %874
      %v877 = vsel %vm732, %v872, 0
      %v880 = vsel %vm762, %v875, 0
      %882 = vmatpush.bf16.msra.mxu0 0
      %883 = vmatpush.bf16.msra.mxu0 0
      %884 = vmatpush.bf16.msra.mxu0 0
      %885 = vmatpush.bf16.msra.mxu0 0
      %886 = vmatpush.bf16.msra.mxu0 0
      %887 = vmatpush.bf16.msra.mxu0 0
      %888 = vmatpush.bf16.msra.mxu0 0
      %889 = vmatpush.bf16.msra.mxu0 %v880
      %890 = vmatmul.bf16.gmra.mxu0 %v877
      %v891 = vpop.f32.mrf.mxu0
      %v892 = vadd.f32 0.0, %v891
      %v893 = vpop.f32.mrf.mxu0
      %894 = vdwg.mxu0
      %895 = vrot.lane.b32.xlu0 %v706, 48
      %v896 = vpop.permute.xlu0 %895
      %v898 = vsel %vm732, %v873, 0
      %v901 = vsel %vm762, %v896, 0
      %903 = vmatpush.bf16.msra.mxu0 0
      %904 = vmatpush.bf16.msra.mxu0 0
      %905 = vmatpush.bf16.msra.mxu0 0
      %906 = vmatpush.bf16.msra.mxu0 0
      %907 = vmatpush.bf16.msra.mxu0 0
      %908 = vmatpush.bf16.msra.mxu0 0
      %909 = vmatpush.bf16.msra.mxu0 0
      %910 = vmatpush.bf16.msra.mxu0 %v901
      %911 = vmatmul.bf16.gmra.mxu0 %v898
      %v912 = vpop.f32.mrf.mxu0
      %v913 = vadd.f32 0.0, %v912
      %v914 = vpop.f32.mrf.mxu0
      %915 = vdwg.mxu0
      %918 = vrot.lane.b32.xlu0 %v892, 16
      %v919 = vpop.permute.xlu0 %918
      %920 = vrot.lane.b32.xlu0 %v913, 16
      %v921 = vpop.permute.xlu0 %920
      %v924 = vsel %vm684, %v776, %v919
      %v925 = vsel %vm684, %v797, %v921
      %v926 = vpack.c.bf16 %v925, %v924
      %v927 = vld [vmem:[%s562] sm:$0xf]
      %v928 = vld [vmem:[%s562 + $0x4] sm:$0xf]
      %v929 = vld [vmem:[%s562 + $0x8] sm:$0xf]
      %v930 = vld [vmem:[%s562 + $0xc] sm:$0xf]
      %v931 = vld [vmem:[%s565] sm:$0x1]
      %v933 = vperm.slane %v931, 0
      %v939 = vunpack.c.l.b16 %v927
      %v940 = vunpack.c.l.b16 %v928
      %v941 = vunpack.c.l.b16 %v929
      %v942 = vunpack.c.l.b16 %v930
      %v943 = vpack.c.b16 %v940, %v939
      %v944 = vpack.c.b16 %v942, %v941
      %v948 = vsel %vm653, %v926, 0
      %950 = vmatpush.bf16.msra.mxu0 0
      %951 = vmatpush.bf16.msra.mxu0 0
      %952 = vmatpush.bf16.msra.mxu0 0
      %953 = vmatpush.bf16.msra.mxu0 0
      %954 = vmatpush.bf16.msra.mxu0 0
      %955 = vmatpush.bf16.msra.mxu0 0
      %956 = vmatpush.bf16.msra.mxu0 %v944
      %957 = vmatpush.bf16.msra.mxu0 %v943
      %958 = vmatmul.bf16.gmra.mxu0 %v948
      %v959 = vpop.f32.mrf.mxu0
      %v960 = vadd.f32 %v933, %v959
      %v961 = vpop.f32.mrf.mxu0
      %v962 = vadd.f32 %v933, %v961
      %963 = vdwg.mxu0
      %v964 = vadd.f32 %v630, %v960
      %v965 = vadd.f32 %v631, %v962
      %v966 = vld [vmem:[%s584] sm:$0x1]
      %v967 = vld [vmem:[%s587] sm:$0x1]
      %v968 = vsel %vm653, %v964, 0.0
      %969 = vadd.xlane.f32.xlu0 %v968
      %v970 = vpop.xlane.xlu0 %969
      %v971 = vsel %vm653, %v965, 0.0
      %972 = vadd.xlane.f32.xlu0 %v971
      %v973 = vpop.xlane.xlu0 %972
      %v974 = vrcp.pop 32.0
      %v975 = vmul.f32 32.0, %v974
      %v976 = vsub.f32 1.0, %v975
      %v977 = vmul.f32 %v974, %v976
      %v978 = vadd.f32 %v974, %v977
      %vm979 = vweird.f32 %v974
      %v980 = vsel %vm979, %v974, %v978
      %v981 = vmul.f32 %v970, %v980
      %v982 = vmul.f32 %v973, %v980
      %v983 = vsub.f32 %v964, %v981
      %v984 = vsub.f32 %v965, %v982
      %v985 = vmul.f32 %v983, %v983
      %v986 = vmul.f32 %v984, %v984
      %v987 = vsel %vm653, %v985, 0.0
      %988 = vadd.xlane.f32.xlu0 %v987
      %v989 = vpop.xlane.xlu0 %988
      %v990 = vsel %vm653, %v986, 0.0
      %991 = vadd.xlane.f32.xlu0 %v990
      %v992 = vpop.xlane.xlu0 %991
      %v993 = vmul.f32 %v989, %v980
      %v994 = vmul.f32 %v992, %v980
      %v995 = vadd.f32 %v993, 1e-05
      %v996 = vadd.f32 %v994, 1e-05
      %v997 = vrsqrt.pop %v995
      %v998 = vmul.f32 %v997, %v995
      %v999 = vmul.f32 %v998, %v997
      %v1000 = vmul.f32 0.5, %v999
      %v1001 = vsub.f32 1.5, %v1000
      %v1002 = vmul.f32 %v997, %v1001
      %vm1003 = vweird.f32 %v995
      %vm1004 = vweird.f32 %v997
      %vm1005 = vmor %vm1003, %vm1004
      %v1006 = vsel %vm1005, %v997, %v1002
      %v1007 = vrsqrt.pop %v996
      %v1008 = vmul.f32 %v1007, %v996
      %v1009 = vmul.f32 %v1008, %v1007
      %v1010 = vmul.f32 0.5, %v1009
      %v1011 = vsub.f32 1.5, %v1010
      %v1012 = vmul.f32 %v1007, %v1011
      %vm1013 = vweird.f32 %v996
      %vm1014 = vweird.f32 %v1007
      %vm1015 = vmor %vm1013, %vm1014
      %v1016 = vsel %vm1015, %v1007, %v1012
      %v1017 = vmul.f32 %v983, %v1006
      %v1018 = vmul.f32 %v984, %v1016
      %v1020 = vperm.slane %v966, 0
      %v1022 = vmul.f32 %v1017, %v1020
      %v1023 = vmul.f32 %v1018, %v1020
      %v1025 = vperm.slane %v967, 0
      %v1027 = vadd.f32 %v1022, %v1025
      %v1028 = vadd.f32 %v1023, %v1025
      %v1029 = vpack.c.bf16 %v1028, %v1027
      %v1030 = vld [vmem:[%s570] sm:$0xf]
      %v1031 = vld [vmem:[%s570 + $0x4] sm:$0xf]
      %v1032 = vld [vmem:[%s570 + $0x8] sm:$0xf]
      %v1033 = vld [vmem:[%s570 + $0xc] sm:$0xf]
      %v1034 = vld [vmem:[%s573] sm:$0x1]
      %v1036 = vperm.slane %v1034, 0
      %v1042 = vunpack.c.l.b16 %v1030
      %v1043 = vunpack.c.l.b16 %v1031
      %v1044 = vunpack.c.l.b16 %v1032
      %v1045 = vunpack.c.l.b16 %v1033
      %v1046 = vpack.c.b16 %v1043, %v1042
      %v1047 = vpack.c.b16 %v1045, %v1044
      %v1051 = vsel %vm653, %v1029, 0
      %1053 = vmatpush.bf16.msra.mxu0 0
      %1054 = vmatpush.bf16.msra.mxu0 0
      %1055 = vmatpush.bf16.msra.mxu0 0
      %1056 = vmatpush.bf16.msra.mxu0 0
      %1057 = vmatpush.bf16.msra.mxu0 0
      %1058 = vmatpush.bf16.msra.mxu0 0
      %1059 = vmatpush.bf16.msra.mxu0 %v1047
      %1060 = vmatpush.bf16.msra.mxu0 %v1046
      %1061 = vmatmul.bf16.gmra.mxu0 %v1051
      %v1062 = vpop.f32.mrf.mxu0
      %v1063 = vadd.f32 %v1036, %v1062
      %v1064 = vpop.f32.mrf.mxu0
      %v1065 = vadd.f32 %v1036, %v1064
      %1066 = vdwg.mxu0
      %v1067 = vmax.f32 %v1063, 0.0
      %v1068 = vmax.f32 %v1065, 0.0
      %v1069 = vpack.c.bf16 %v1068, %v1067
      %v1070 = vld [vmem:[%s578] sm:$0xf]
      %v1071 = vld [vmem:[%s578 + $0x4] sm:$0xf]
      %v1072 = vld [vmem:[%s578 + $0x8] sm:$0xf]
      %v1073 = vld [vmem:[%s578 + $0xc] sm:$0xf]
      %v1074 = vld [vmem:[%s578 + $0x10] sm:$0xf]
      %v1075 = vld [vmem:[%s578 + $0x14] sm:$0xf]
      %v1076 = vld [vmem:[%s578 + $0x18] sm:$0xf]
      %v1077 = vld [vmem:[%s578 + $0x1c] sm:$0xf]
      %v1078 = vld [vmem:[%s581] sm:$0x1]
      %v1080 = vperm.slane %v1078, 0
      %v1090 = vunpack.c.l.b16 %v1070
      %v1091 = vunpack.c.l.b16 %v1071
      %v1092 = vunpack.c.l.b16 %v1072
      %v1093 = vunpack.c.l.b16 %v1073
      %v1094 = vunpack.c.l.b16 %v1074
      %v1095 = vunpack.c.l.b16 %v1075
      %v1096 = vunpack.c.l.b16 %v1076
      %v1097 = vunpack.c.l.b16 %v1077
      %v1098 = vpack.c.b16 %v1091, %v1090
      %v1099 = vpack.c.b16 %v1093, %v1092
      %v1100 = vpack.c.b16 %v1095, %v1094
      %v1101 = vpack.c.b16 %v1097, %v1096
      %vm1106 = vcmask 523264
      %v1108 = vsel %vm1106, %v1069, 0
      %1110 = vmatpush.bf16.msra.mxu0 0
      %1111 = vmatpush.bf16.msra.mxu0 0
      %1112 = vmatpush.bf16.msra.mxu0 0
      %1113 = vmatpush.bf16.msra.mxu0 0
      %1114 = vmatpush.bf16.msra.mxu0 %v1101
      %1115 = vmatpush.bf16.msra.mxu0 %v1100
      %1116 = vmatpush.bf16.msra.mxu0 %v1099
      %1117 = vmatpush.bf16.msra.mxu0 %v1098
      %1118 = vmatmul.bf16.gmra.mxu0 %v1108
      %v1119 = vpop.f32.mrf.mxu0
      %v1120 = vadd.f32 %v1080, %v1119
      %v1121 = vpop.f32.mrf.mxu0
      %v1122 = vadd.f32 %v1080, %v1121
      %1123 = vdwg.mxu0
      %v1124 = vadd.f32 %v1027, %v1120
      %v1125 = vadd.f32 %v1028, %v1122
      %v1126 = vld [vmem:[%s590] sm:$0x1]
      %v1127 = vld [vmem:[%s593] sm:$0x1]
      %v1128 = vsel %vm653, %v1124, 0.0
      %1129 = vadd.xlane.f32.xlu0 %v1128
      %v1130 = vpop.xlane.xlu0 %1129
      %v1131 = vsel %vm653, %v1125, 0.0
      %1132 = vadd.xlane.f32.xlu0 %v1131
      %v1133 = vpop.xlane.xlu0 %1132
      %v1134 = vmul.f32 %v1130, %v980
      %v1135 = vmul.f32 %v1133, %v980
      %v1136 = vsub.f32 %v1124, %v1134
      %v1137 = vsub.f32 %v1125, %v1135
      %v1138 = vmul.f32 %v1136, %v1136
      %v1139 = vmul.f32 %v1137, %v1137
      %v1140 = vsel %vm653, %v1138, 0.0
      %1141 = vadd.xlane.f32.xlu0 %v1140
      %v1142 = vpop.xlane.xlu0 %1141
      %v1143 = vsel %vm653, %v1139, 0.0
      %1144 = vadd.xlane.f32.xlu0 %v1143
      %v1145 = vpop.xlane.xlu0 %1144
      %v1146 = vmul.f32 %v1142, %v980
      %v1147 = vmul.f32 %v1145, %v980
      %v1148 = vadd.f32 %v1146, 1e-05
      %v1149 = vadd.f32 %v1147, 1e-05
      %v1150 = vrsqrt.pop %v1148
      %v1151 = vmul.f32 %v1150, %v1148
      %v1152 = vmul.f32 %v1151, %v1150
      %v1153 = vmul.f32 0.5, %v1152
      %v1154 = vsub.f32 1.5, %v1153
      %v1155 = vmul.f32 %v1150, %v1154
      %vm1156 = vweird.f32 %v1148
      %vm1157 = vweird.f32 %v1150
      %vm1158 = vmor %vm1156, %vm1157
      %v1159 = vsel %vm1158, %v1150, %v1155
      %v1160 = vrsqrt.pop %v1149
      %v1161 = vmul.f32 %v1160, %v1149
      %v1162 = vmul.f32 %v1161, %v1160
      %v1163 = vmul.f32 0.5, %v1162
      %v1164 = vsub.f32 1.5, %v1163
      %v1165 = vmul.f32 %v1160, %v1164
      %vm1166 = vweird.f32 %v1149
      %vm1167 = vweird.f32 %v1160
      %vm1168 = vmor %vm1166, %vm1167
      %v1169 = vsel %vm1168, %v1160, %v1165
      %v1170 = vmul.f32 %v1136, %v1159
      %v1171 = vmul.f32 %v1137, %v1169
      %v1173 = vperm.slane %v1126, 0
      %v1175 = vmul.f32 %v1170, %v1173
      %v1176 = vmul.f32 %v1171, %v1173
      %v1178 = vperm.slane %v1127, 0
      %v1180 = vadd.f32 %v1175, %v1178
      %v1181 = vadd.f32 %v1176, %v1178
      %1182 = vst.msk [vmem:[%s598] sm:$0xff] %vm653, %v1180
      %1183 = vst.msk [vmem:[%s598 + $0x8] sm:$0xff] %vm653, %v1181
      %s1184 = smul.u32 2, %s28
      %p1185 = scmp.lt.s32.totalorder %s1184, 1
      %s1186 = scalar_select %p1185, %s1184, 1
      %s1187 = smul.addr %s1186, 8
      %s1188 = scalar_lea.vmem %s13, %s1187
      // Predicated region
      $region92: #{transformer_forward.2} parent=67 // pred_check
        %p1189 = pneg %p366
      $region93: #{transformer_forward.2} parent=67 // pred_check_branch
        %1191 = sbr.rel (%p1189) target = $region95
      $region94: #{transformer_forward.2} parent=67 // pred_region
        %s1192 = smul.u32 2, %s28
      $region95: #{transformer_forward.2} parent=67 // pred_fallthru
        _
      // Predicated region
      $region96: #{transformer_forward.2} parent=67 // pred_check
        %p1193 = pneg %p366
      $region97: #{transformer_forward.2} parent=67 // pred_check_branch
        %1195 = sbr.rel (%p1193) target = $region99
      $region98: #{transformer_forward.2} parent=67 // pred_region
        %s1196 = smul.u32 2, %s28
        %p1197 = scmp.lt.s32.totalorder %s1196, 1
        %s1198 = scalar_select %p1197, %s1196, 1
        %s1199 = smul.addr %s1198, 8
        %s1200 = scalar_lea.vmem %s13, %s1199
      $region99: #{transformer_forward.2} parent=67 // pred_fallthru
        _
    $region68: #{transformer_forward.2} parent=5 // pred_fallthru
      _
    %p1201 = scmp.le.s32.totalorder 2, %s19
    // Predicated region
    $region100: #{transformer_forward.2} parent=5 // pred_check
      %p1202 = pneg %p1201
    $region101: #{transformer_forward.2} parent=5 // pred_check_branch
      %1204 = sbr.rel (%p1202) target = $region103
    $region102: #{transformer_forward.2} parent=5 // pred_region
      %s1205 = ssub.s32 %s19, 2
    $region103: #{transformer_forward.2} parent=5 // pred_fallthru
      _
  $region6: #{transformer_forward.2} parent=0 // loop_footer
    %s23 = sadd.s32 1, %s19
  $region7: #{transformer_forward.2} parent=0 // loop_footer_branch
    %18 = sbr.rel target = $region3
  $region8: #{transformer_forward.2} parent=0 // loop_exit
    _
  %1206 = vsyncmov [#allocation2]
  %s1207 = vpop.sfrf %1206
  %p1208 = scmp.eq.s32.totalorder %s1207, 0
  %p1209 = pneg %p1208
  %1211 = shalt.err (%p1209)

</llo_original>
